<compile_context>
chip_gen: v7x
topology: tpu7x:2x2x1
jax: 0.10.0
libtpu: 0.0.40
codegen_flags: <defaults>
</compile_context>

<pallas_src>
import functools
from math import exp

import numpy as np
import jax
import jax.numpy as jnp
from jax.experimental import pallas as pl
from jax.experimental.pallas import tpu as pltpu

WINDOW_SIZE = 11
SIGMA = 1.5
C1 = 0.01 ** 2
C2 = 0.03 ** 2


def _gaussian_1d(window_size=WINDOW_SIZE, sigma=SIGMA):
    # Mirrors gaussian() from the PyTorch module (float32 math, normalized).
    g = np.array(
        [exp(-((x - window_size // 2) ** 2) / float(2 * sigma ** 2))
         for x in range(window_size)],
        dtype=np.float32,
    )
    return g / g.sum()


def _round_up(x, m):
    return (x + m - 1) // m * m


def _divisors_desc(n):
    return [d for d in range(n, 0, -1) if n % d == 0]


def _ssim_group_kernel(img1_ref, img2_ref, tw_ref, th_ref, out_ref, *,
                       CG, H, W, H_a, W_a):
    """One (batch, channel-group) step: separable Gaussian convs on the MXU."""
    p1 = img1_ref[0].astype(jnp.float32)   # (CG, H, W) — native dtype cast here
    p2 = img2_ref[0].astype(jnp.float32)

    # Five fields convolved with the same Gaussian: img1, img2, img1^2, img2^2,
    # img1*img2.  Field f, channel c lives at plane (f*CG + c).
    fields = jnp.concatenate([p1, p2, p1 * p1, p2 * p2, p1 * p2], axis=0)
    fields = fields.reshape(5 * CG * H, W)                    # (5*CG*H, W)

    # Lane-axis (W) conv as ONE big-M MXU matmul against the banded Toeplitz
    # (the "same" zero-padding is baked into tw, so no halo-padded input).
    fw = jnp.dot(fields, tw_ref[...], preferred_element_type=jnp.float32)
    # fw: (5*CG*H, W_a); columns >= W are exactly zero.

    # Validity mask for the (8,128)-alignment region only — emitted solely for
    # axes that are actually padded, and hoisted out of the channel loop.
    valid = None
    if H_a != H:
        rows = jax.lax.broadcasted_iota(jnp.int32, (H_a, W_a), 0)
        valid = rows < H
    if W_a != W:
        cols = jax.lax.broadcasted_iota(jnp.int32, (H_a, W_a), 1)
        cmask = cols < W
        valid = cmask if valid is None else (valid & cmask)

    th = th_ref[...]                                          # (H_a, H), resident

    partial_rows = []
    for c in range(CG):
        # Sublane-axis (H) conv: five small 2D MXU matmuls against the single
        # resident Toeplitz (no broadcast materialization).
        def hconv(f):
            start = (f * CG + c) * H
            return jnp.dot(th, fw[start:start + H, :],
                           preferred_element_type=jnp.float32)   # (H_a, W_a)

        mu1 = hconv(0)
        mu2 = hconv(1)
        e11 = hconv(2)
        e22 = hconv(3)
        e12 = hconv(4)

        mu1_sq = mu1 * mu1
        mu2_sq = mu2 * mu2
        mu1_mu2 = mu1 * mu2
        sigma1_sq = e11 - mu1_sq
        sigma2_sq = e22 - mu2_sq
        sigma12 = e12 - mu1_mu2

        num = (2.0 * mu1_mu2 + C1) * (2.0 * sigma12 + C2)
        den = (mu1_sq + mu2_sq + C1) * (sigma1_sq + sigma2_sq + C2)
        # Divide on the EUP: approx reciprocal + one Newton step (den >= C1*C2).
        r = pl.reciprocal(den, approx=True)
        r = r * (2.0 - den * r)
        ssim_map = num * r                                    # (H_a, W_a)

        if valid is not None:
            ssim_map = jnp.where(valid, ssim_map, 0.0)

        partial_rows.append(jnp.sum(ssim_map, axis=0, keepdims=True))  # (1, W_a)

    pc = jnp.concatenate(partial_rows, axis=0)                # (CG, W_a)
    out_ref[0, 0, :] = jnp.sum(pc, axis=1)                    # per-channel sums (CG,)


def ssim(img1, img2, window_size=WINDOW_SIZE, size_average=True):
    """JAX/Pallas equivalent of SSIM(window_size=11, size_average=...)(img1, img2)."""
    assert img1.shape == img2.shape
    B, C, H, W = img1.shape
    pad = window_size // 2
    H_a = _round_up(H, 8)      # sublane-aligned output height
    W_a = _round_up(W, 128)    # lane-aligned output width

    g = _gaussian_1d(window_size)

    # Banded Toeplitz operators with the conv "same" zero-padding folded in:
    #   row pass :  X(H, W)   @ t_w(W, W_a)  -> (H, W_a)
    #   col pass :  t_h(H_a,H) @ Y(H, W_a)   -> (H_a, W_a)
    # Columns >= W of t_w and rows >= H of t_h are zero, so the alignment
    # region of the conv outputs is exactly zero (masked before reduction).
    t_w = np.zeros((W, W_a), np.float32)
    t_h = np.zeros((H_a, H), np.float32)
    for d in range(window_size):
        off = d - pad
        k = np.arange(W)
        j = k - off
        m = (j >= 0) & (j < W)
        t_w[k[m], j[m]] = g[d]
        i = np.arange(H)
        h = i + off
        m2 = (h >= 0) & (h < H)
        t_h[i[m2], h[m2]] = g[d]
    t_w = jnp.asarray(t_w)
    t_h = jnp.asarray(t_h)

    # Choose the channel-group size CG (a divisor of C) under a VMEM budget so
    # large planes stay inside v7x's 64 MiB while small planes batch all
    # channels per step.
    in_itemsize = int(np.dtype(img1.dtype).itemsize)

    def _est_bytes(cg):
        inputs = 2 * 2 * cg * H * W * in_itemsize            # 2 inputs x 2 pipeline bufs
        toeplitz = 2 * (W * W_a + H_a * H) * 4
        fields = 7 * cg * H * W * 4                          # p1, p2 casts + 5-field concat
        fw = 5 * cg * H * W_a * 4
        work = 12 * H_a * W_a * 4                            # conv planes + elementwise temps
        return inputs + toeplitz + fields + fw + work

    budget = 20 * 2 ** 20
    CG = 1
    for d in _divisors_desc(C):
        if _est_bytes(d) <= budget:
            CG = d
            break
    G = C // CG

    vmem_limit = int(min(48 * 2 ** 20,
                         max(int(1.5 * _est_bytes(CG)) + 4 * 2 ** 20, 32 * 2 ** 20)))

    kernel = functools.partial(_ssim_group_kernel, CG=CG, H=H, W=W,
                               H_a=H_a, W_a=W_a)

    per_group_sums = pl.pallas_call(
        kernel,
        out_shape=jax.ShapeDtypeStruct((B, G, CG), jnp.float32),
        grid_spec=pltpu.PrefetchScalarGridSpec(
            num_scalar_prefetch=0,
            grid=(B, G),
            in_specs=[
                pl.BlockSpec((1, CG, H, W), lambda b, gi: (b, gi, 0, 0)),
                pl.BlockSpec((1, CG, H, W), lambda b, gi: (b, gi, 0, 0)),
                pl.BlockSpec((W, W_a), lambda b, gi: (0, 0)),    # resident
                pl.BlockSpec((H_a, H), lambda b, gi: (0, 0)),    # resident
            ],
            out_specs=pl.BlockSpec((1, 1, CG), lambda b, gi: (b, gi, 0)),
        ),
        compiler_params=pltpu.CompilerParams(
            dimension_semantics=("parallel", "parallel"),
            vmem_limit_bytes=vmem_limit,
        ),
    )(img1, img2, t_w, t_h)

    per_channel_sums = per_group_sums.reshape(B, C)

    if size_average:
        # ssim_map.mean() over all B*C*H*W elements -> scalar
        return jnp.sum(per_channel_sums) / (B * C * H * W)
    else:
        # ssim_map.mean(1).mean(1).mean(1) -> shape (B,)
        return jnp.sum(per_channel_sums, axis=1) / (C * H * W)


if __name__ == "__main__":
    key = jax.random.PRNGKey(0)
    k1, k2 = jax.random.split(key)
    # small shapes consistent with the module's NCHW forward
    img1 = jax.random.uniform(k1, (2, 4, 16, 16), dtype=jnp.float32)
    img2 = jax.random.uniform(k2, (2, 4, 16, 16), dtype=jnp.float32)

    out = ssim(img1, img2)            # scalar (size_average=True)
    jax.block_until_ready(out)
    print("KERNEL_OK")
</pallas_src>

<mosaic_0001>
module attributes {stable_mosaic.version = 11 : i64} {
  func.func @_ssim_group_kernel(%arg0: i32, %arg1: i32, %arg2: memref<1x4x16x16xf32, #tpu.memory_space<vmem>>, %arg3: memref<1x4x16x16xf32, #tpu.memory_space<vmem>>, %arg4: memref<16x128xf32, #tpu.memory_space<vmem>>, %arg5: memref<16x16xf32, #tpu.memory_space<vmem>>, %arg6: memref<1x1x4xf32, #tpu.memory_space<vmem>>) attributes {dimension_semantics = [#tpu.dimension_semantics<parallel>, #tpu.dimension_semantics<parallel>], iteration_bounds = array<i64: 2, 1>, scalar_prefetch = 0 : i64, scratch_operands = 0 : i64, tpu.core_type = #tpu.core_type<tc>, window_params = [{transform_indices = @transform_0, window_bounds = array<i64: 1, 4, 16, 16>}, {transform_indices = @transform_1, window_bounds = array<i64: 1, 4, 16, 16>}, {pipeline_mode = #tpu.pipeline_mode<synchronous>, transform_indices = @transform_2, window_bounds = array<i64: 16, 128>}, {pipeline_mode = #tpu.pipeline_mode<synchronous>, transform_indices = @transform_3, window_bounds = array<i64: 16, 16>}, {transform_indices = @transform_4, window_bounds = array<i64: 1, 1, 4>}]} {
    %c0 = arith.constant 0 : index
    %c0_0 = arith.constant 0 : index
    %c0_1 = arith.constant 0 : index
    %c0_2 = arith.constant 0 : index
    %0 = vector.load %arg2[%c0, %c0_0, %c0_1, %c0_2] : memref<1x4x16x16xf32, #tpu.memory_space<vmem>>, vector<1x4x16x16xf32>
    %1 = vector.shape_cast %0 : vector<1x4x16x16xf32> to vector<4x16x16xf32>
    %c0_3 = arith.constant 0 : index
    %c0_4 = arith.constant 0 : index
    %c0_5 = arith.constant 0 : index
    %c0_6 = arith.constant 0 : index
    %2 = vector.load %arg3[%c0_3, %c0_4, %c0_5, %c0_6] : memref<1x4x16x16xf32, #tpu.memory_space<vmem>>, vector<1x4x16x16xf32>
    %3 = vector.shape_cast %2 : vector<1x4x16x16xf32> to vector<4x16x16xf32>
    %4 = arith.mulf %1, %1 : vector<4x16x16xf32>
    %5 = arith.mulf %3, %3 : vector<4x16x16xf32>
    %6 = arith.mulf %1, %3 : vector<4x16x16xf32>
    %7 = tpu.concatenate %1, %3, %4, %5, %6 in 0 : vector<4x16x16xf32>, vector<4x16x16xf32>, vector<4x16x16xf32>, vector<4x16x16xf32>, vector<4x16x16xf32> -> vector<20x16x16xf32>
    %8 = vector.shape_cast %7 : vector<20x16x16xf32> to vector<320x16xf32>
    %c0_7 = arith.constant 0 : index
    %c0_8 = arith.constant 0 : index
    %9 = vector.load %arg4[%c0_7, %c0_8] : memref<16x128xf32, #tpu.memory_space<vmem>>, vector<16x128xf32>
    %cst = arith.constant dense<0.000000e+00> : vector<320x128xf32>
    %10 = tpu.matmul %8, %9, %cst {dimension_numbers = #tpu.dot_dimension_numbers<[1], [0], [0], [1], [0, 0, 1, 1], [], []>} : vector<320x16xf32>, vector<16x128xf32>, vector<320x128xf32> -> vector<320x128xf32>
    %11 = tpu.iota {dimensions = array<i32: 1>} : vector<16x128xi32>
    %c16_i32 = arith.constant 16 : i32
    %12 = vector.broadcast %c16_i32 : i32 to vector<16x128xi32>
    %13 = arith.cmpi slt, %11, %12 : vector<16x128xi32>
    %c0_9 = arith.constant 0 : index
    %c0_10 = arith.constant 0 : index
    %14 = vector.load %arg5[%c0_9, %c0_10] : memref<16x16xf32, #tpu.memory_space<vmem>>, vector<16x16xf32>
    %15 = vector.extract_strided_slice %10 {offsets = [0, 0], sizes = [16, 128], strides = [1, 1]} : vector<320x128xf32> to vector<16x128xf32>
    %cst_11 = arith.constant dense<0.000000e+00> : vector<16x128xf32>
    %16 = tpu.matmul %14, %15, %cst_11 {dimension_numbers = #tpu.dot_dimension_numbers<[1], [0], [0], [1], [0, 0, 1, 1], [], []>} : vector<16x16xf32>, vector<16x128xf32>, vector<16x128xf32> -> vector<16x128xf32>
    %17 = vector.extract_strided_slice %10 {offsets = [64, 0], sizes = [16, 128], strides = [1, 1]} : vector<320x128xf32> to vector<16x128xf32>
    %cst_12 = arith.constant dense<0.000000e+00> : vector<16x128xf32>
    %18 = tpu.matmul %14, %17, %cst_12 {dimension_numbers = #tpu.dot_dimension_numbers<[1], [0], [0], [1], [0, 0, 1, 1], [], []>} : vector<16x16xf32>, vector<16x128xf32>, vector<16x128xf32> -> vector<16x128xf32>
    %19 = vector.extract_strided_slice %10 {offsets = [128, 0], sizes = [16, 128], strides = [1, 1]} : vector<320x128xf32> to vector<16x128xf32>
    %cst_13 = arith.constant dense<0.000000e+00> : vector<16x128xf32>
    %20 = tpu.matmul %14, %19, %cst_13 {dimension_numbers = #tpu.dot_dimension_numbers<[1], [0], [0], [1], [0, 0, 1, 1], [], []>} : vector<16x16xf32>, vector<16x128xf32>, vector<16x128xf32> -> vector<16x128xf32>
    %21 = vector.extract_strided_slice %10 {offsets = [192, 0], sizes = [16, 128], strides = [1, 1]} : vector<320x128xf32> to vector<16x128xf32>
    %cst_14 = arith.constant dense<0.000000e+00> : vector<16x128xf32>
    %22 = tpu.matmul %14, %21, %cst_14 {dimension_numbers = #tpu.dot_dimension_numbers<[1], [0], [0], [1], [0, 0, 1, 1], [], []>} : vector<16x16xf32>, vector<16x128xf32>, vector<16x128xf32> -> vector<16x128xf32>
    %23 = vector.extract_strided_slice %10 {offsets = [256, 0], sizes = [16, 128], strides = [1, 1]} : vector<320x128xf32> to vector<16x128xf32>
    %cst_15 = arith.constant dense<0.000000e+00> : vector<16x128xf32>
    %24 = tpu.matmul %14, %23, %cst_15 {dimension_numbers = #tpu.dot_dimension_numbers<[1], [0], [0], [1], [0, 0, 1, 1], [], []>} : vector<16x16xf32>, vector<16x128xf32>, vector<16x128xf32> -> vector<16x128xf32>
    %25 = arith.mulf %16, %16 : vector<16x128xf32>
    %26 = arith.mulf %18, %18 : vector<16x128xf32>
    %27 = arith.mulf %16, %18 : vector<16x128xf32>
    %28 = arith.subf %20, %25 : vector<16x128xf32>
    %29 = arith.subf %22, %26 : vector<16x128xf32>
    %30 = arith.subf %24, %27 : vector<16x128xf32>
    %cst_16 = arith.constant 2.000000e+00 : f32
    %31 = vector.broadcast %cst_16 : f32 to vector<16x128xf32>
    %32 = arith.mulf %31, %27 : vector<16x128xf32>
    %cst_17 = arith.constant 9.99999974E-5 : f32
    %33 = vector.broadcast %cst_17 : f32 to vector<16x128xf32>
    %34 = arith.addf %32, %33 : vector<16x128xf32>
    %cst_18 = arith.constant 2.000000e+00 : f32
    %35 = vector.broadcast %cst_18 : f32 to vector<16x128xf32>
    %36 = arith.mulf %35, %30 : vector<16x128xf32>
    %cst_19 = arith.constant 8.99999984E-4 : f32
    %37 = vector.broadcast %cst_19 : f32 to vector<16x128xf32>
    %38 = arith.addf %36, %37 : vector<16x128xf32>
    %39 = arith.mulf %34, %38 : vector<16x128xf32>
    %40 = arith.addf %25, %26 : vector<16x128xf32>
    %cst_20 = arith.constant 9.99999974E-5 : f32
    %41 = vector.broadcast %cst_20 : f32 to vector<16x128xf32>
    %42 = arith.addf %40, %41 : vector<16x128xf32>
    %43 = arith.addf %28, %29 : vector<16x128xf32>
    %cst_21 = arith.constant 8.99999984E-4 : f32
    %44 = vector.broadcast %cst_21 : f32 to vector<16x128xf32>
    %45 = arith.addf %43, %44 : vector<16x128xf32>
    %46 = arith.mulf %42, %45 : vector<16x128xf32>
    %47 = tpu.reciprocal %46 {approx = true} : vector<16x128xf32> -> vector<16x128xf32>
    %48 = arith.mulf %46, %47 : vector<16x128xf32>
    %cst_22 = arith.constant 2.000000e+00 : f32
    %49 = vector.broadcast %cst_22 : f32 to vector<16x128xf32>
    %50 = arith.subf %49, %48 : vector<16x128xf32>
    %51 = arith.mulf %47, %50 : vector<16x128xf32>
    %52 = arith.mulf %39, %51 : vector<16x128xf32>
    %cst_23 = arith.constant 0.000000e+00 : f32
    %53 = vector.broadcast %cst_23 : f32 to vector<16x128xf32>
    %54 = arith.select %13, %52, %53 : vector<16x128xi1>, vector<16x128xf32>
    %cst_24 = arith.constant dense<0.000000e+00> : vector<128xf32>
    %55 = vector.multi_reduction <add>, %54, %cst_24 [0] : vector<16x128xf32> to vector<128xf32>
    %56 = vector.shape_cast %55 : vector<128xf32> to vector<1x128xf32>
    %57 = vector.extract_strided_slice %10 {offsets = [16, 0], sizes = [16, 128], strides = [1, 1]} : vector<320x128xf32> to vector<16x128xf32>
    %cst_25 = arith.constant dense<0.000000e+00> : vector<16x128xf32>
    %58 = tpu.matmul %14, %57, %cst_25 {dimension_numbers = #tpu.dot_dimension_numbers<[1], [0], [0], [1], [0, 0, 1, 1], [], []>} : vector<16x16xf32>, vector<16x128xf32>, vector<16x128xf32> -> vector<16x128xf32>
    %59 = vector.extract_strided_slice %10 {offsets = [80, 0], sizes = [16, 128], strides = [1, 1]} : vector<320x128xf32> to vector<16x128xf32>
    %cst_26 = arith.constant dense<0.000000e+00> : vector<16x128xf32>
    %60 = tpu.matmul %14, %59, %cst_26 {dimension_numbers = #tpu.dot_dimension_numbers<[1], [0], [0], [1], [0, 0, 1, 1], [], []>} : vector<16x16xf32>, vector<16x128xf32>, vector<16x128xf32> -> vector<16x128xf32>
    %61 = vector.extract_strided_slice %10 {offsets = [144, 0], sizes = [16, 128], strides = [1, 1]} : vector<320x128xf32> to vector<16x128xf32>
    %cst_27 = arith.constant dense<0.000000e+00> : vector<16x128xf32>
    %62 = tpu.matmul %14, %61, %cst_27 {dimension_numbers = #tpu.dot_dimension_numbers<[1], [0], [0], [1], [0, 0, 1, 1], [], []>} : vector<16x16xf32>, vector<16x128xf32>, vector<16x128xf32> -> vector<16x128xf32>
    %63 = vector.extract_strided_slice %10 {offsets = [208, 0], sizes = [16, 128], strides = [1, 1]} : vector<320x128xf32> to vector<16x128xf32>
    %cst_28 = arith.constant dense<0.000000e+00> : vector<16x128xf32>
    %64 = tpu.matmul %14, %63, %cst_28 {dimension_numbers = #tpu.dot_dimension_numbers<[1], [0], [0], [1], [0, 0, 1, 1], [], []>} : vector<16x16xf32>, vector<16x128xf32>, vector<16x128xf32> -> vector<16x128xf32>
    %65 = vector.extract_strided_slice %10 {offsets = [272, 0], sizes = [16, 128], strides = [1, 1]} : vector<320x128xf32> to vector<16x128xf32>
    %cst_29 = arith.constant dense<0.000000e+00> : vector<16x128xf32>
    %66 = tpu.matmul %14, %65, %cst_29 {dimension_numbers = #tpu.dot_dimension_numbers<[1], [0], [0], [1], [0, 0, 1, 1], [], []>} : vector<16x16xf32>, vector<16x128xf32>, vector<16x128xf32> -> vector<16x128xf32>
    %67 = arith.mulf %58, %58 : vector<16x128xf32>
    %68 = arith.mulf %60, %60 : vector<16x128xf32>
    %69 = arith.mulf %58, %60 : vector<16x128xf32>
    %70 = arith.subf %62, %67 : vector<16x128xf32>
    %71 = arith.subf %64, %68 : vector<16x128xf32>
    %72 = arith.subf %66, %69 : vector<16x128xf32>
    %cst_30 = arith.constant 2.000000e+00 : f32
    %73 = vector.broadcast %cst_30 : f32 to vector<16x128xf32>
    %74 = arith.mulf %73, %69 : vector<16x128xf32>
    %cst_31 = arith.constant 9.99999974E-5 : f32
    %75 = vector.broadcast %cst_31 : f32 to vector<16x128xf32>
    %76 = arith.addf %74, %75 : vector<16x128xf32>
    %cst_32 = arith.constant 2.000000e+00 : f32
    %77 = vector.broadcast %cst_32 : f32 to vector<16x128xf32>
    %78 = arith.mulf %77, %72 : vector<16x128xf32>
    %cst_33 = arith.constant 8.99999984E-4 : f32
    %79 = vector.broadcast %cst_33 : f32 to vector<16x128xf32>
    %80 = arith.addf %78, %79 : vector<16x128xf32>
    %81 = arith.mulf %76, %80 : vector<16x128xf32>
    %82 = arith.addf %67, %68 : vector<16x128xf32>
    %cst_34 = arith.constant 9.99999974E-5 : f32
    %83 = vector.broadcast %cst_34 : f32 to vector<16x128xf32>
    %84 = arith.addf %82, %83 : vector<16x128xf32>
    %85 = arith.addf %70, %71 : vector<16x128xf32>
    %cst_35 = arith.constant 8.99999984E-4 : f32
    %86 = vector.broadcast %cst_35 : f32 to vector<16x128xf32>
    %87 = arith.addf %85, %86 : vector<16x128xf32>
    %88 = arith.mulf %84, %87 : vector<16x128xf32>
    %89 = tpu.reciprocal %88 {approx = true} : vector<16x128xf32> -> vector<16x128xf32>
    %90 = arith.mulf %88, %89 : vector<16x128xf32>
    %cst_36 = arith.constant 2.000000e+00 : f32
    %91 = vector.broadcast %cst_36 : f32 to vector<16x128xf32>
    %92 = arith.subf %91, %90 : vector<16x128xf32>
    %93 = arith.mulf %89, %92 : vector<16x128xf32>
    %94 = arith.mulf %81, %93 : vector<16x128xf32>
    %cst_37 = arith.constant 0.000000e+00 : f32
    %95 = vector.broadcast %cst_37 : f32 to vector<16x128xf32>
    %96 = arith.select %13, %94, %95 : vector<16x128xi1>, vector<16x128xf32>
    %cst_38 = arith.constant dense<0.000000e+00> : vector<128xf32>
    %97 = vector.multi_reduction <add>, %96, %cst_38 [0] : vector<16x128xf32> to vector<128xf32>
    %98 = vector.shape_cast %97 : vector<128xf32> to vector<1x128xf32>
    %99 = vector.extract_strided_slice %10 {offsets = [32, 0], sizes = [16, 128], strides = [1, 1]} : vector<320x128xf32> to vector<16x128xf32>
    %cst_39 = arith.constant dense<0.000000e+00> : vector<16x128xf32>
    %100 = tpu.matmul %14, %99, %cst_39 {dimension_numbers = #tpu.dot_dimension_numbers<[1], [0], [0], [1], [0, 0, 1, 1], [], []>} : vector<16x16xf32>, vector<16x128xf32>, vector<16x128xf32> -> vector<16x128xf32>
    %101 = vector.extract_strided_slice %10 {offsets = [96, 0], sizes = [16, 128], strides = [1, 1]} : vector<320x128xf32> to vector<16x128xf32>
    %cst_40 = arith.constant dense<0.000000e+00> : vector<16x128xf32>
    %102 = tpu.matmul %14, %101, %cst_40 {dimension_numbers = #tpu.dot_dimension_numbers<[1], [0], [0], [1], [0, 0, 1, 1], [], []>} : vector<16x16xf32>, vector<16x128xf32>, vector<16x128xf32> -> vector<16x128xf32>
    %103 = vector.extract_strided_slice %10 {offsets = [160, 0], sizes = [16, 128], strides = [1, 1]} : vector<320x128xf32> to vector<16x128xf32>
    %cst_41 = arith.constant dense<0.000000e+00> : vector<16x128xf32>
    %104 = tpu.matmul %14, %103, %cst_41 {dimension_numbers = #tpu.dot_dimension_numbers<[1], [0], [0], [1], [0, 0, 1, 1], [], []>} : vector<16x16xf32>, vector<16x128xf32>, vector<16x128xf32> -> vector<16x128xf32>
    %105 = vector.extract_strided_slice %10 {offsets = [224, 0], sizes = [16, 128], strides = [1, 1]} : vector<320x128xf32> to vector<16x128xf32>
    %cst_42 = arith.constant dense<0.000000e+00> : vector<16x128xf32>
    %106 = tpu.matmul %14, %105, %cst_42 {dimension_numbers = #tpu.dot_dimension_numbers<[1], [0], [0], [1], [0, 0, 1, 1], [], []>} : vector<16x16xf32>, vector<16x128xf32>, vector<16x128xf32> -> vector<16x128xf32>
    %107 = vector.extract_strided_slice %10 {offsets = [288, 0], sizes = [16, 128], strides = [1, 1]} : vector<320x128xf32> to vector<16x128xf32>
    %cst_43 = arith.constant dense<0.000000e+00> : vector<16x128xf32>
    %108 = tpu.matmul %14, %107, %cst_43 {dimension_numbers = #tpu.dot_dimension_numbers<[1], [0], [0], [1], [0, 0, 1, 1], [], []>} : vector<16x16xf32>, vector<16x128xf32>, vector<16x128xf32> -> vector<16x128xf32>
    %109 = arith.mulf %100, %100 : vector<16x128xf32>
    %110 = arith.mulf %102, %102 : vector<16x128xf32>
    %111 = arith.mulf %100, %102 : vector<16x128xf32>
    %112 = arith.subf %104, %109 : vector<16x128xf32>
    %113 = arith.subf %106, %110 : vector<16x128xf32>
    %114 = arith.subf %108, %111 : vector<16x128xf32>
    %cst_44 = arith.constant 2.000000e+00 : f32
    %115 = vector.broadcast %cst_44 : f32 to vector<16x128xf32>
    %116 = arith.mulf %115, %111 : vector<16x128xf32>
    %cst_45 = arith.constant 9.99999974E-5 : f32
    %117 = vector.broadcast %cst_45 : f32 to vector<16x128xf32>
    %118 = arith.addf %116, %117 : vector<16x128xf32>
    %cst_46 = arith.constant 2.000000e+00 : f32
    %119 = vector.broadcast %cst_46 : f32 to vector<16x128xf32>
    %120 = arith.mulf %119, %114 : vector<16x128xf32>
    %cst_47 = arith.constant 8.99999984E-4 : f32
    %121 = vector.broadcast %cst_47 : f32 to vector<16x128xf32>
    %122 = arith.addf %120, %121 : vector<16x128xf32>
    %123 = arith.mulf %118, %122 : vector<16x128xf32>
    %124 = arith.addf %109, %110 : vector<16x128xf32>
    %cst_48 = arith.constant 9.99999974E-5 : f32
    %125 = vector.broadcast %cst_48 : f32 to vector<16x128xf32>
    %126 = arith.addf %124, %125 : vector<16x128xf32>
    %127 = arith.addf %112, %113 : vector<16x128xf32>
    %cst_49 = arith.constant 8.99999984E-4 : f32
    %128 = vector.broadcast %cst_49 : f32 to vector<16x128xf32>
    %129 = arith.addf %127, %128 : vector<16x128xf32>
    %130 = arith.mulf %126, %129 : vector<16x128xf32>
    %131 = tpu.reciprocal %130 {approx = true} : vector<16x128xf32> -> vector<16x128xf32>
    %132 = arith.mulf %130, %131 : vector<16x128xf32>
    %cst_50 = arith.constant 2.000000e+00 : f32
    %133 = vector.broadcast %cst_50 : f32 to vector<16x128xf32>
    %134 = arith.subf %133, %132 : vector<16x128xf32>
    %135 = arith.mulf %131, %134 : vector<16x128xf32>
    %136 = arith.mulf %123, %135 : vector<16x128xf32>
    %cst_51 = arith.constant 0.000000e+00 : f32
    %137 = vector.broadcast %cst_51 : f32 to vector<16x128xf32>
    %138 = arith.select %13, %136, %137 : vector<16x128xi1>, vector<16x128xf32>
    %cst_52 = arith.constant dense<0.000000e+00> : vector<128xf32>
    %139 = vector.multi_reduction <add>, %138, %cst_52 [0] : vector<16x128xf32> to vector<128xf32>
    %140 = vector.shape_cast %139 : vector<128xf32> to vector<1x128xf32>
    %141 = vector.extract_strided_slice %10 {offsets = [48, 0], sizes = [16, 128], strides = [1, 1]} : vector<320x128xf32> to vector<16x128xf32>
    %cst_53 = arith.constant dense<0.000000e+00> : vector<16x128xf32>
    %142 = tpu.matmul %14, %141, %cst_53 {dimension_numbers = #tpu.dot_dimension_numbers<[1], [0], [0], [1], [0, 0, 1, 1], [], []>} : vector<16x16xf32>, vector<16x128xf32>, vector<16x128xf32> -> vector<16x128xf32>
    %143 = vector.extract_strided_slice %10 {offsets = [112, 0], sizes = [16, 128], strides = [1, 1]} : vector<320x128xf32> to vector<16x128xf32>
    %cst_54 = arith.constant dense<0.000000e+00> : vector<16x128xf32>
    %144 = tpu.matmul %14, %143, %cst_54 {dimension_numbers = #tpu.dot_dimension_numbers<[1], [0], [0], [1], [0, 0, 1, 1], [], []>} : vector<16x16xf32>, vector<16x128xf32>, vector<16x128xf32> -> vector<16x128xf32>
    %145 = vector.extract_strided_slice %10 {offsets = [176, 0], sizes = [16, 128], strides = [1, 1]} : vector<320x128xf32> to vector<16x128xf32>
    %cst_55 = arith.constant dense<0.000000e+00> : vector<16x128xf32>
    %146 = tpu.matmul %14, %145, %cst_55 {dimension_numbers = #tpu.dot_dimension_numbers<[1], [0], [0], [1], [0, 0, 1, 1], [], []>} : vector<16x16xf32>, vector<16x128xf32>, vector<16x128xf32> -> vector<16x128xf32>
    %147 = vector.extract_strided_slice %10 {offsets = [240, 0], sizes = [16, 128], strides = [1, 1]} : vector<320x128xf32> to vector<16x128xf32>
    %cst_56 = arith.constant dense<0.000000e+00> : vector<16x128xf32>
    %148 = tpu.matmul %14, %147, %cst_56 {dimension_numbers = #tpu.dot_dimension_numbers<[1], [0], [0], [1], [0, 0, 1, 1], [], []>} : vector<16x16xf32>, vector<16x128xf32>, vector<16x128xf32> -> vector<16x128xf32>
    %149 = vector.extract_strided_slice %10 {offsets = [304, 0], sizes = [16, 128], strides = [1, 1]} : vector<320x128xf32> to vector<16x128xf32>
    %cst_57 = arith.constant dense<0.000000e+00> : vector<16x128xf32>
    %150 = tpu.matmul %14, %149, %cst_57 {dimension_numbers = #tpu.dot_dimension_numbers<[1], [0], [0], [1], [0, 0, 1, 1], [], []>} : vector<16x16xf32>, vector<16x128xf32>, vector<16x128xf32> -> vector<16x128xf32>
    %151 = arith.mulf %142, %142 : vector<16x128xf32>
    %152 = arith.mulf %144, %144 : vector<16x128xf32>
    %153 = arith.mulf %142, %144 : vector<16x128xf32>
    %154 = arith.subf %146, %151 : vector<16x128xf32>
    %155 = arith.subf %148, %152 : vector<16x128xf32>
    %156 = arith.subf %150, %153 : vector<16x128xf32>
    %cst_58 = arith.constant 2.000000e+00 : f32
    %157 = vector.broadcast %cst_58 : f32 to vector<16x128xf32>
    %158 = arith.mulf %157, %153 : vector<16x128xf32>
    %cst_59 = arith.constant 9.99999974E-5 : f32
    %159 = vector.broadcast %cst_59 : f32 to vector<16x128xf32>
    %160 = arith.addf %158, %159 : vector<16x128xf32>
    %cst_60 = arith.constant 2.000000e+00 : f32
    %161 = vector.broadcast %cst_60 : f32 to vector<16x128xf32>
    %162 = arith.mulf %161, %156 : vector<16x128xf32>
    %cst_61 = arith.constant 8.99999984E-4 : f32
    %163 = vector.broadcast %cst_61 : f32 to vector<16x128xf32>
    %164 = arith.addf %162, %163 : vector<16x128xf32>
    %165 = arith.mulf %160, %164 : vector<16x128xf32>
    %166 = arith.addf %151, %152 : vector<16x128xf32>
    %cst_62 = arith.constant 9.99999974E-5 : f32
    %167 = vector.broadcast %cst_62 : f32 to vector<16x128xf32>
    %168 = arith.addf %166, %167 : vector<16x128xf32>
    %169 = arith.addf %154, %155 : vector<16x128xf32>
    %cst_63 = arith.constant 8.99999984E-4 : f32
    %170 = vector.broadcast %cst_63 : f32 to vector<16x128xf32>
    %171 = arith.addf %169, %170 : vector<16x128xf32>
    %172 = arith.mulf %168, %171 : vector<16x128xf32>
    %173 = tpu.reciprocal %172 {approx = true} : vector<16x128xf32> -> vector<16x128xf32>
    %174 = arith.mulf %172, %173 : vector<16x128xf32>
    %cst_64 = arith.constant 2.000000e+00 : f32
    %175 = vector.broadcast %cst_64 : f32 to vector<16x128xf32>
    %176 = arith.subf %175, %174 : vector<16x128xf32>
    %177 = arith.mulf %173, %176 : vector<16x128xf32>
    %178 = arith.mulf %165, %177 : vector<16x128xf32>
    %cst_65 = arith.constant 0.000000e+00 : f32
    %179 = vector.broadcast %cst_65 : f32 to vector<16x128xf32>
    %180 = arith.select %13, %178, %179 : vector<16x128xi1>, vector<16x128xf32>
    %cst_66 = arith.constant dense<0.000000e+00> : vector<128xf32>
    %181 = vector.multi_reduction <add>, %180, %cst_66 [0] : vector<16x128xf32> to vector<128xf32>
    %182 = vector.shape_cast %181 : vector<128xf32> to vector<1x128xf32>
    %183 = tpu.concatenate %56, %98, %140, %182 in 0 : vector<1x128xf32>, vector<1x128xf32>, vector<1x128xf32>, vector<1x128xf32> -> vector<4x128xf32>
    %cst_67 = arith.constant dense<0.000000e+00> : vector<4xf32>
    %184 = vector.multi_reduction <add>, %183, %cst_67 [1] : vector<4x128xf32> to vector<4xf32>
    %c0_68 = arith.constant 0 : index
    %c0_69 = arith.constant 0 : index
    %c0_70 = arith.constant 0 : index
    %185 = vector.load %arg6[%c0_68, %c0_69, %c0_70] : memref<1x1x4xf32, #tpu.memory_space<vmem>>, vector<1x1x4xf32>
    %186 = vector.shape_cast %185 : vector<1x1x4xf32> to vector<4xf32>
    %187 = vector.shape_cast %184 : vector<4xf32> to vector<1x1x4xf32>
    tpu.vector_store %arg6[%c0_68, %c0_69, %c0_70], %187 {strides = array<i32>} : memref<1x1x4xf32, #tpu.memory_space<vmem>>, vector<1x1x4xf32>,
    return
  }
  func.func @transform_0(%arg0: i32, %arg1: i32) -> (i32, i32, i32, i32) {
    %c0_i32 = arith.constant 0 : i32
    %c0_i32_0 = arith.constant 0 : i32
    %c0_i32_1 = arith.constant 0 : i32
    return %arg0, %arg1, %c0_i32, %c0_i32_0 : i32, i32, i32, i32
  }
  func.func @transform_1(%arg0: i32, %arg1: i32) -> (i32, i32, i32, i32) {
    %c0_i32 = arith.constant 0 : i32
    %c0_i32_0 = arith.constant 0 : i32
    %c0_i32_1 = arith.constant 0 : i32
    return %arg0, %arg1, %c0_i32, %c0_i32_0 : i32, i32, i32, i32
  }
  func.func @transform_2(%arg0: i32, %arg1: i32) -> (i32, i32) {
    %c0_i32 = arith.constant 0 : i32
    %c0_i32_0 = arith.constant 0 : i32
    %c0_i32_1 = arith.constant 0 : i32
    return %c0_i32, %c0_i32_0 : i32, i32
  }
  func.func @transform_3(%arg0: i32, %arg1: i32) -> (i32, i32) {
    %c0_i32 = arith.constant 0 : i32
    %c0_i32_0 = arith.constant 0 : i32
    %c0_i32_1 = arith.constant 0 : i32
    return %c0_i32, %c0_i32_0 : i32, i32
  }
  func.func @transform_4(%arg0: i32, %arg1: i32) -> (i32, i32, i32) {
    %c0_i32 = arith.constant 0 : i32
    %c0_i32_0 = arith.constant 0 : i32
    return %arg0, %arg1, %c0_i32 : i32, i32, i32
  }
}

</mosaic_0001>

<llo_original>
// kernel: tpu_custom_call.1
$region0: #{tpu_custom_call.1}
  #allocation0 [shape = 'u32[]', space=smem, size = 0x4, offset = 0x4, fixed_abs, tag = 'smem constant byte address 0x4 - core index']
  #allocation1 [shape = 'u32[144,128]{1,0:T(1,128)}', space=vmem, size = 0x12000, scoped, tag = 'internal scratch']
  %s0 = inlined_call_operand.hbm [shape: f32[2,4,16,16], index: 0, kind: input, shape index: {}]
  %s1 = inlined_call_operand.hbm [shape: f32[2,4,16,16], index: 1, kind: input, shape index: {}]
  %s2 = inlined_call_operand.hbm [shape: f32[16,128], index: 2, kind: input, shape index: {}]
  %s3 = inlined_call_operand.hbm [shape: f32[16,16], index: 3, kind: input, shape index: {}]
  %s4 = inlined_call_operand.hbm [shape: f32[2,1,4], index: 4, kind: output, shape index: {}]
  %s5 = sld [smem:[#allocation0]]
  $region65: #{tpu_custom_call.1} parent=0
    _
  %s7 = ssub.s32 1, %s5
  %s8 = scalar_select 0, %s7, %s5
  $region1: #{tpu_custom_call.1} parent=0
    #allocation2 [shape = 'u8[65536]{0}', space=vmem, size = 0x10000, scoped, tag = 'input window, operand 0']
    #allocation3 [shape = 's32[2]{0}', space=sflag, size = 0x8, scoped, tag = 'scoped memory for tpu_custom_call.1']
    #allocation4 [shape = 's32[2]{0}', space=sflag, size = 0x8, scoped, tag = 'scoped memory for tpu_custom_call.1']
    #allocation5 [shape = 'u8[65536]{0}', space=vmem, size = 0x10000, scoped, tag = 'input window, operand 1']
    #allocation6 [shape = 's32[2]{0}', space=sflag, size = 0x8, scoped, tag = 'scoped memory for tpu_custom_call.1']
    #allocation7 [shape = 'u8[8192]{0}', space=vmem, size = 0x2000, scoped, tag = 'input window, operand 2, single buffered']
    #allocation8 [shape = 'u8[8192]{0}', space=vmem, size = 0x2000, scoped, tag = 'input window, operand 3, single buffered']
    #allocation9 [shape = 's32[1]{0}', space=sflag, size = 0x4, scoped, tag = 'scoped memory for tpu_custom_call.1']
    #allocation10 [shape = 'u8[1024]{0}', space=vmem, size = 0x400, scoped, tag = 'output window, operand 0']
    %9 = vsyncpa [#allocation3], 0
    %s10 = scalar_lea.sflag [#allocation3], 1
    %11 = vsyncpa %s10, 0
    %12 = vsyncpa [#allocation6], 0
    %s13 = scalar_lea.sflag [#allocation6], 1
    %14 = vsyncpa %s13, 0
    %15 = vsyncpa [#allocation9], 0
    %16 = vsyncpa [#allocation4], 0
    %s17 = scalar_lea.sflag [#allocation4], 1
    %18 = vsyncpa %s17, 0
    loop: start=0, step=1, limit=4
    $region2: #{tpu_custom_call.1} parent=1 // loop_pre_header
      _
    $region3: #{tpu_custom_call.1} parent=1 // loop_header
      %s20 = sphi 0, %s24
      %p21 = scmp.ge.s32.totalorder %s20, 4
      %s27 = sphi 0, %s39
      %s28 = sphi 0, %s35
      %s29 = sphi 0, %s27
      %s30 = sphi 0, %s28
      %s31 = sphi 0, %s29
      %s32 = sphi 0, %s30
      %s44 = sphi 0, %s46
      %s47 = sphi 0, %s44
      %s48 = sphi 0, %s47
      %s64 = sphi 0, %s48
      %s72 = sphi 0, %s74
      %s75 = sphi 0, %s72
      %s76 = sphi 0, %s75
      %s92 = sphi 0, %s76
      %s96 = sphi 0, %s96
      %s98 = sphi 0, %s96
      %s99 = sphi 0, %s98
      %s113 = sphi 0, %s99
      %s117 = sphi 0, %s117
      %s119 = sphi 0, %s117
      %s120 = sphi 0, %s119
      %s134 = sphi 0, %s120
      %s142 = sphi 0, %s144
      %s145 = sphi 0, %s142
      %s146 = sphi 0, %s145
      %s162 = sphi 0, %s146
    $region4: #{tpu_custom_call.1} parent=1 // loop_header_branch
      %23 = sbr.rel (%p21) target = $region8
    $region5: #{tpu_custom_call.1} parent=1 // loop_body
      %s25 = ssub.s32 %s20, 1
      %s26 = ssub.s32 %s20, 2
      %s33 = sadd.s32 1, %s28
      %p34 = scmp.ge.s32.totalorder %s33, 1
      %s35 = scalar_select %p34, 0, %s33
      %s36 = sadd.s32 1, %s27
      %s37 = scalar_select %p34, %s36, %s27
      %p38 = scmp.ge.s32.totalorder %s37, 2
      %s39 = scalar_select %p38, 0, %s37
      %s40 = ssub.s32 %s27, %s39
      %s41 = ssub.s32 %s28, %s35
      %s42 = sor.u32 %s40, %s41
      %p43 = scmp.eq.s32.totalorder %s42, 0
      %s45 = sadd.s32 %s44, 1
      %s46 = scalar_select %p43, %s44, %s45
      %p49 = pneg %p43
      %p50 = scmp.eq.s32.totalorder %s20, 1
      %p51 = por %p49, %p50
      %p52 = scmp.ne.s32.totalorder %s44, %s47
      %p53 = scmp.eq.s32.totalorder %s20, 0
      %p54 = por %p52, %p53
      %p55 = scmp.ne.s32.totalorder %s44, %s47
      %p56 = scmp.eq.s32.totalorder %s25, 1
      %p57 = por %p55, %p56
      %p58 = scmp.ne.s32.totalorder %s47, %s48
      %p59 = scmp.eq.s32.totalorder %s25, 0
      %p60 = por %p58, %p59
      %p61 = scmp.ne.s32.totalorder %s47, %s48
      %p62 = scmp.eq.s32.totalorder %s26, 1
      %p63 = por %p61, %p62
      %p65 = scmp.ne.s32.totalorder %s48, %s64
      %p66 = scmp.eq.s32.totalorder %s26, 0
      %p67 = por %p65, %p66
      %s68 = ssub.s32 %s27, %s39
      %s69 = ssub.s32 %s28, %s35
      %s70 = sor.u32 %s68, %s69
      %p71 = scmp.eq.s32.totalorder %s70, 0
      %s73 = sadd.s32 %s72, 1
      %s74 = scalar_select %p71, %s72, %s73
      %p77 = pneg %p71
      %p78 = scmp.eq.s32.totalorder %s20, 1
      %p79 = por %p77, %p78
      %p80 = scmp.ne.s32.totalorder %s72, %s75
      %p81 = scmp.eq.s32.totalorder %s20, 0
      %p82 = por %p80, %p81
      %p83 = scmp.ne.s32.totalorder %s72, %s75
      %p84 = scmp.eq.s32.totalorder %s25, 1
      %p85 = por %p83, %p84
      %p86 = scmp.ne.s32.totalorder %s75, %s76
      %p87 = scmp.eq.s32.totalorder %s25, 0
      %p88 = por %p86, %p87
      %p89 = scmp.ne.s32.totalorder %s75, %s76
      %p90 = scmp.eq.s32.totalorder %s26, 1
      %p91 = por %p89, %p90
      %p93 = scmp.ne.s32.totalorder %s76, %s92
      %p94 = scmp.eq.s32.totalorder %s26, 0
      %p95 = por %p93, %p94
      %s97 = sadd.s32 %s96, 1
      %p100 = scmp.eq.s32.totalorder %s20, 1
      %p101 = scmp.ne.s32.totalorder %s96, %s98
      %p102 = scmp.eq.s32.totalorder %s20, 0
      %p103 = por %p101, %p102
      %p104 = scmp.ne.s32.totalorder %s96, %s98
      %p105 = scmp.eq.s32.totalorder %s25, 1
      %p106 = por %p104, %p105
      %p107 = scmp.ne.s32.totalorder %s98, %s99
      %p108 = scmp.eq.s32.totalorder %s25, 0
      %p109 = por %p107, %p108
      %p110 = scmp.ne.s32.totalorder %s98, %s99
      %p111 = scmp.eq.s32.totalorder %s26, 1
      %p112 = por %p110, %p111
      %p114 = scmp.ne.s32.totalorder %s99, %s113
      %p115 = scmp.eq.s32.totalorder %s26, 0
      %p116 = por %p114, %p115
      %s118 = sadd.s32 %s117, 1
      %p121 = scmp.eq.s32.totalorder %s20, 1
      %p122 = scmp.ne.s32.totalorder %s117, %s119
      %p123 = scmp.eq.s32.totalorder %s20, 0
      %p124 = por %p122, %p123
      %p125 = scmp.ne.s32.totalorder %s117, %s119
      %p126 = scmp.eq.s32.totalorder %s25, 1
      %p127 = por %p125, %p126
      %p128 = scmp.ne.s32.totalorder %s119, %s120
      %p129 = scmp.eq.s32.totalorder %s25, 0
      %p130 = por %p128, %p129
      %p131 = scmp.ne.s32.totalorder %s119, %s120
      %p132 = scmp.eq.s32.totalorder %s26, 1
      %p133 = por %p131, %p132
      %p135 = scmp.ne.s32.totalorder %s120, %s134
      %p136 = scmp.eq.s32.totalorder %s26, 0
      %p137 = por %p135, %p136
      %s138 = ssub.s32 %s27, %s39
      %s139 = ssub.s32 %s28, %s35
      %s140 = sor.u32 %s138, %s139
      %p141 = scmp.eq.s32.totalorder %s140, 0
      %s143 = sadd.s32 %s142, 1
      %s144 = scalar_select %p141, %s142, %s143
      %p147 = pneg %p141
      %p148 = scmp.eq.s32.totalorder %s20, 1
      %p149 = por %p147, %p148
      %p150 = scmp.ne.s32.totalorder %s142, %s145
      %p151 = scmp.eq.s32.totalorder %s20, 0
      %p152 = por %p150, %p151
      %p153 = scmp.ne.s32.totalorder %s142, %s145
      %p154 = scmp.eq.s32.totalorder %s25, 1
      %p155 = por %p153, %p154
      %p156 = scmp.ne.s32.totalorder %s145, %s146
      %p157 = scmp.eq.s32.totalorder %s25, 0
      %p158 = por %p156, %p157
      %p159 = scmp.ne.s32.totalorder %s145, %s146
      %p160 = scmp.eq.s32.totalorder %s26, 1
      %p161 = por %p159, %p160
      %p163 = scmp.ne.s32.totalorder %s146, %s162
      %p164 = scmp.eq.s32.totalorder %s26, 0
      %p165 = por %p163, %p164
      %p166 = scmp.le.s32.totalorder 1, %s20
      %p167 = scmp.lt.s32.totalorder %s20, 3
      %p168 = pnand %p166, %p167
      %p169 = pneg %p168
      // Predicated region
      $region9: #{tpu_custom_call.1} parent=5 // pred_check
        _
      $region10: #{tpu_custom_call.1} parent=5 // pred_check_branch
        %171 = sbr.rel (%p168) target = $region12
      $region11: #{tpu_custom_call.1} parent=5 // pred_region
        %s172 = ssub.s32 %s20, 1
        // Predicated region
        $region13: #{tpu_custom_call.1} parent=11 // pred_check
          %p173 = pneg %p109
        $region14: #{tpu_custom_call.1} parent=11 // pred_check_branch
          %175 = sbr.rel (%p173) target = $region16
        $region15: #{tpu_custom_call.1} parent=11 // pred_region
          %s177 = ssub.s32 256, 256
          %178 = vsyncadd [#allocation6], %s177
          %s179 = sshll.u32 [#allocation7], 4
          %s180 = int_to_ptr.vmem [resolvable:$true] %s179
          %185 = dma.hbm_to_vmem [thread:$0]  %s2, 256, %s180, [#allocation6], 128, 128, 8
        $region16: #{tpu_custom_call.1} parent=11 // pred_fallthru
          _
        // Predicated region
        $region17: #{tpu_custom_call.1} parent=11 // pred_check
          %p186 = pneg %p130
        $region18: #{tpu_custom_call.1} parent=11 // pred_check_branch
          %188 = sbr.rel (%p186) target = $region20
        $region19: #{tpu_custom_call.1} parent=11 // pred_region
          %s190 = ssub.s32 256, 256
          %191 = vsyncadd [#allocation9], %s190
          %s192 = sshll.u32 [#allocation8], 4
          %s193 = int_to_ptr.vmem [resolvable:$true] %s192
          %198 = dma.hbm_to_vmem [thread:$0]  %s3, 256, %s193, [#allocation9], 128, 128, 8
        $region20: #{tpu_custom_call.1} parent=11 // pred_fallthru
          _
      $region12: #{tpu_custom_call.1} parent=5 // pred_fallthru
        _
      %p199 = scmp.lt.s32.totalorder %s20, 2
      // Predicated region
      $region21: #{tpu_custom_call.1} parent=5 // pred_check
        %p200 = pneg %p199
      $region22: #{tpu_custom_call.1} parent=5 // pred_check_branch
        %202 = sbr.rel (%p200) target = $region24
      $region23: #{tpu_custom_call.1} parent=5 // pred_region
        // Predicated region
        $region25: #{tpu_custom_call.1} parent=23 // pred_check
          %p203 = pneg %p54
        $region26: #{tpu_custom_call.1} parent=23 // pred_check_branch
          %205 = sbr.rel (%p203) target = $region28
        $region27: #{tpu_custom_call.1} parent=23 // pred_region
          %s206 = sand.u32 %s44, 1
          %s207 = scalar_lea.sflag [#allocation3], %s206
          %s208 = sand.u32 %s44, 1
          %s209 = smul.addr %s208, 64
          %s210 = scalar_lea.vmem [#allocation2], %s209
          %s211 = smul.u32 4, %s28
          %s213 = ssub.s32 1024, 1024
          %214 = vsyncadd %s207, %s213
          %s215 = smul.addr %s211, 2
          %s216 = smul.addr %s27, 8
          %s217 = sadd.s32 %s215, %s216
          %s218 = smul.addr %s217, 128
          %s219 = scalar_lea.hbm %s0, %s218
          %s220 = sshll.u32 %s210, 4
          %s221 = int_to_ptr.vmem [resolvable:$true] %s220
          %226 = dma.hbm_to_vmem [thread:$0]  %s219, 1024, %s221, %s207, 128, 128, 8
        $region28: #{tpu_custom_call.1} parent=23 // pred_fallthru
          _
        // Predicated region
        $region29: #{tpu_custom_call.1} parent=23 // pred_check
          %p227 = pneg %p82
        $region30: #{tpu_custom_call.1} parent=23 // pred_check_branch
          %229 = sbr.rel (%p227) target = $region32
        $region31: #{tpu_custom_call.1} parent=23 // pred_region
          %s230 = sand.u32 %s20, 1
          %s231 = scalar_lea.sflag [#allocation6], %s230
          %s232 = sand.u32 %s72, 1
          %s233 = smul.addr %s232, 64
          %s234 = scalar_lea.vmem [#allocation5], %s233
          %s235 = smul.u32 4, %s28
          %s237 = ssub.s32 1024, 1024
          %238 = vsyncadd %s231, %s237
          %s239 = smul.addr %s235, 2
          %s240 = smul.addr %s27, 8
          %s241 = sadd.s32 %s239, %s240
          %s242 = smul.addr %s241, 128
          %s243 = scalar_lea.hbm %s1, %s242
          %s244 = sshll.u32 %s234, 4
          %s245 = int_to_ptr.vmem [resolvable:$true] %s244
          %250 = dma.hbm_to_vmem [thread:$0]  %s243, 1024, %s245, %s231, 128, 128, 8
        $region32: #{tpu_custom_call.1} parent=23 // pred_fallthru
          _
      $region24: #{tpu_custom_call.1} parent=5 // pred_fallthru
        _
      %p251 = scmp.le.s32.totalorder 1, %s20
      %p252 = scmp.lt.s32.totalorder %s20, 3
      %p253 = pnand %p251, %p252
      %p254 = pneg %p253
      // Predicated region
      $region33: #{tpu_custom_call.1} parent=5 // pred_check
        _
      $region34: #{tpu_custom_call.1} parent=5 // pred_check_branch
        %256 = sbr.rel (%p253) target = $region36
      $region35: #{tpu_custom_call.1} parent=5 // pred_region
        %s257 = ssub.s32 %s20, 1
        %s258 = sand.u32 %s47, 1
        %s259 = scalar_lea.sflag [#allocation3], %s258
        %s260 = sand.u32 %s47, 1
        %s261 = smul.addr %s260, 64
        %s262 = scalar_lea.vmem [#allocation2], %s261
        // Predicated region
        $region37: #{tpu_custom_call.1} parent=35 // pred_check
          %p263 = pneg %p60
        $region38: #{tpu_custom_call.1} parent=35 // pred_check_branch
          %265 = sbr.rel (%p263) target = $region40
        $region39: #{tpu_custom_call.1} parent=35 // pred_region
          %266 = dma.done %s259, 1024
        $region40: #{tpu_custom_call.1} parent=35 // pred_fallthru
          _
        %s267 = sand.u32 %s25, 1
        %s268 = scalar_lea.sflag [#allocation6], %s267
        %s269 = sand.u32 %s75, 1
        %s270 = smul.addr %s269, 64
        %s271 = scalar_lea.vmem [#allocation5], %s270
        // Predicated region
        $region41: #{tpu_custom_call.1} parent=35 // pred_check
          %p272 = pneg %p88
        $region42: #{tpu_custom_call.1} parent=35 // pred_check_branch
          %274 = sbr.rel (%p272) target = $region44
        $region43: #{tpu_custom_call.1} parent=35 // pred_region
          %275 = dma.done %s268, 1024
        $region44: #{tpu_custom_call.1} parent=35 // pred_fallthru
          _
        // Predicated region
        $region45: #{tpu_custom_call.1} parent=35 // pred_check
          %p276 = pneg %p109
        $region46: #{tpu_custom_call.1} parent=35 // pred_check_branch
          %278 = sbr.rel (%p276) target = $region48
        $region47: #{tpu_custom_call.1} parent=35 // pred_region
          %279 = dma.done [#allocation6], 256
        $region48: #{tpu_custom_call.1} parent=35 // pred_fallthru
          _
        // Predicated region
        $region49: #{tpu_custom_call.1} parent=35 // pred_check
          %p280 = pneg %p130
        $region50: #{tpu_custom_call.1} parent=35 // pred_check_branch
          %282 = sbr.rel (%p280) target = $region52
        $region51: #{tpu_custom_call.1} parent=35 // pred_region
          %283 = dma.done [#allocation9], 256
        $region52: #{tpu_custom_call.1} parent=35 // pred_fallthru
          _
        %s284 = sand.u32 %s47, 1
        %s285 = scalar_lea.sflag [#allocation3], %s284
        %s286 = sand.u32 %s47, 1
        %s287 = smul.addr %s286, 64
        %s288 = scalar_lea.vmem [#allocation2], %s287
        %p289 = pneg %p60
        %p290 = pneg %p57
        %s291 = sand.u32 %s25, 1
        %s292 = scalar_lea.sflag [#allocation6], %s291
        %s293 = sand.u32 %s75, 1
        %s294 = smul.addr %s293, 64
        %s295 = scalar_lea.vmem [#allocation5], %s294
        %p296 = pneg %p88
        %p297 = pneg %p85
        %p298 = pneg %p109
        %p299 = pneg %p106
        %p300 = pneg %p130
        %p301 = pneg %p127
        %p302 = pneg %p158
        %p303 = pneg %p155
        %s304 = sand.u32 %s145, 1
        %s305 = scalar_lea.sflag [#allocation4], %s304
        %s306 = sand.u32 %s145, 1
        %s307 = scalar_lea.vmem [#allocation10], %s306
        %s308 = smul.u32 4, %s30
        %s309 = smul.u32 4, %s30
        %v310 = vld [vmem:[%s262] sm:$0xff]
        %v311 = vld [vmem:[%s262 + $0x8] sm:$0xff]
        %v312 = vld [vmem:[%s262 + $0x10] sm:$0xff]
        %v313 = vld [vmem:[%s262 + $0x18] sm:$0xff]
        %v314 = vld [vmem:[%s262 + $0x20] sm:$0xff]
        %v315 = vld [vmem:[%s262 + $0x28] sm:$0xff]
        %v316 = vld [vmem:[%s262 + $0x30] sm:$0xff]
        %v317 = vld [vmem:[%s262 + $0x38] sm:$0xff]
        %v318 = vld [vmem:[%s271] sm:$0xff]
        %v319 = vld [vmem:[%s271 + $0x8] sm:$0xff]
        %v320 = vld [vmem:[%s271 + $0x10] sm:$0xff]
        %v321 = vld [vmem:[%s271 + $0x18] sm:$0xff]
        %v322 = vld [vmem:[%s271 + $0x20] sm:$0xff]
        %v323 = vld [vmem:[%s271 + $0x28] sm:$0xff]
        %v324 = vld [vmem:[%s271 + $0x30] sm:$0xff]
        %v325 = vld [vmem:[%s271 + $0x38] sm:$0xff]
        %v326 = vmul.f32 %v310, %v310
        %v327 = vmul.f32 %v311, %v311
        %v328 = vmul.f32 %v312, %v312
        %v329 = vmul.f32 %v313, %v313
        %v330 = vmul.f32 %v314, %v314
        %v331 = vmul.f32 %v315, %v315
        %v332 = vmul.f32 %v316, %v316
        %v333 = vmul.f32 %v317, %v317
        %v334 = vmul.f32 %v318, %v318
        %v335 = vmul.f32 %v319, %v319
        %v336 = vmul.f32 %v320, %v320
        %v337 = vmul.f32 %v321, %v321
        %v338 = vmul.f32 %v322, %v322
        %v339 = vmul.f32 %v323, %v323
        %v340 = vmul.f32 %v324, %v324
        %v341 = vmul.f32 %v325, %v325
        %v342 = vmul.f32 %v310, %v318
        %v343 = vmul.f32 %v311, %v319
        %v344 = vmul.f32 %v312, %v320
        %v345 = vmul.f32 %v313, %v321
        %v346 = vmul.f32 %v314, %v322
        %v347 = vmul.f32 %v315, %v323
        %v348 = vmul.f32 %v316, %v324
        %v349 = vmul.f32 %v317, %v325
        %v350 = vld [vmem:[#allocation7] sm:$0xff]
        %v351 = vld [vmem:[#allocation7 + $0x8] sm:$0xff]
        %vm352 = vcmask 130048
        %v354 = vsel %vm352, %v310, 0
        %v357 = vsel %vm352, %v311, 0
        %v360 = vsel %vm352, %v312, 0
        %v363 = vsel %vm352, %v313, 0
        %v366 = vsel %vm352, %v314, 0
        %v369 = vsel %vm352, %v315, 0
        %v372 = vsel %vm352, %v316, 0
        %v375 = vsel %vm352, %v317, 0
        %v378 = vsel %vm352, %v318, 0
        %v381 = vsel %vm352, %v319, 0
        %v384 = vsel %vm352, %v320, 0
        %v387 = vsel %vm352, %v321, 0
        %v390 = vsel %vm352, %v322, 0
        %v393 = vsel %vm352, %v323, 0
        %v396 = vsel %vm352, %v324, 0
        %v399 = vsel %vm352, %v325, 0
        %v402 = vsel %vm352, %v326, 0
        %v405 = vsel %vm352, %v327, 0
        %v408 = vsel %vm352, %v328, 0
        %v411 = vsel %vm352, %v329, 0
        %v414 = vsel %vm352, %v330, 0
        %v417 = vsel %vm352, %v331, 0
        %v420 = vsel %vm352, %v332, 0
        %v423 = vsel %vm352, %v333, 0
        %v426 = vsel %vm352, %v334, 0
        %v429 = vsel %vm352, %v335, 0
        %v432 = vsel %vm352, %v336, 0
        %v435 = vsel %vm352, %v337, 0
        %v438 = vsel %vm352, %v338, 0
        %v441 = vsel %vm352, %v339, 0
        %v444 = vsel %vm352, %v340, 0
        %v447 = vsel %vm352, %v341, 0
        %v450 = vsel %vm352, %v342, 0
        %v453 = vsel %vm352, %v343, 0
        %v456 = vsel %vm352, %v344, 0
        %v459 = vsel %vm352, %v345, 0
        %v462 = vsel %vm352, %v346, 0
        %v465 = vsel %vm352, %v347, 0
        %v468 = vsel %vm352, %v348, 0
        %v471 = vsel %vm352, %v349, 0
        %473 = vmatprep.subr.mxu0 0.0
        %474 = vmatpush1.msra.mxu0 %v350
        %475 = vmatprep.subr.mxu0 0.0
        %476 = vmatpush1.msra.mxu0 %v351
        %477 = vmatprep.subr.mxu0 0.0
        %478 = vmatpush1.msra.mxu0 0.0
        %479 = vmatprep.subr.mxu0 0.0
        %480 = vmatpush1.msra.mxu0 0.0
        %481 = vmatprep.subr.mxu0 0.0
        %482 = vmatpush1.msra.mxu0 0.0
        %483 = vmatprep.subr.mxu0 0.0
        %484 = vmatpush1.msra.mxu0 0.0
        %485 = vmatprep.subr.mxu0 0.0
        %486 = vmatpush1.msra.mxu0 0.0
        %487 = vmatprep.subr.mxu0 0.0
        %488 = vmatpush1.msra.mxu0 0.0
        %489 = vmatprep.subr.mxu0 0.0
        %490 = vmatpush1.msra.mxu0 0.0
        %491 = vmatprep.subr.mxu0 0.0
        %492 = vmatpush1.msra.mxu0 0.0
        %493 = vmatprep.subr.mxu0 0.0
        %494 = vmatpush1.msra.mxu0 0.0
        %495 = vmatprep.subr.mxu0 0.0
        %496 = vmatpush1.msra.mxu0 0.0
        %497 = vmatprep.subr.mxu0 0.0
        %498 = vmatpush1.msra.mxu0 0.0
        %499 = vmatprep.subr.mxu0 0.0
        %500 = vmatpush1.msra.mxu0 0.0
        %501 = vmatprep.subr.mxu0 0.0
        %502 = vmatpush1.msra.mxu0 0.0
        %503 = vmatprep.subr.mxu0 0.0
        %504 = vmatpush1.msra.mxu0 0.0
        %505 = vmatprep.subr.mxu0 0.0
        %506 = vmatpush1.msra.mxu0 0.0
        %507 = vmatprep.subr.mxu0 0.0
        %508 = vmatpush1.msra.mxu0 0.0
        %509 = vmatprep.subr.mxu0 0.0
        %510 = vmatpush1.msra.mxu0 0.0
        %511 = vmatprep.subr.mxu0 0.0
        %512 = vmatpush1.msra.mxu0 0.0
        %513 = vmatprep.subr.mxu0 0.0
        %514 = vmatpush1.msra.mxu0 0.0
        %515 = vmatprep.subr.mxu0 0.0
        %516 = vmatpush1.msra.mxu0 0.0
        %517 = vmatprep.subr.mxu0 0.0
        %518 = vmatpush1.msra.mxu0 0.0
        %519 = vmatprep.subr.mxu0 0.0
        %520 = vmatpush1.msra.mxu0 0.0
        %521 = vmatprep.subr.mxu0 0.0
        %522 = vmatpush1.msra.mxu0 0.0
        %523 = vmatprep.subr.mxu0 0.0
        %524 = vmatpush1.msra.mxu0 0.0
        %525 = vmatprep.subr.mxu0 0.0
        %526 = vmatpush1.msra.mxu0 0.0
        %527 = vmatprep.subr.mxu0 0.0
        %528 = vmatpush1.msra.mxu0 0.0
        %529 = vmatprep.subr.mxu0 0.0
        %530 = vmatpush1.msra.mxu0 0.0
        %531 = vmatprep.subr.mxu0 0.0
        %532 = vmatpush1.msra.mxu0 0.0
        %533 = vmatprep.subr.mxu0 0.0
        %534 = vmatpush1.msra.mxu0 0.0
        %535 = vmatprep.subr.mxu0 0.0
        %536 = vmatpush1.msra.mxu0 0.0
        %537 = vmatprep.mubr.f32.mxu0 0.0
        %538 = vmatmul.mubr.f32.gmra.mrb[0].mxu0 %v354
        %v539 = vpop.f32.mrb[0].mxu0
        %v540 = vadd.f32 0.0, %v539
        %v541 = vpop.f32.mrb[0].mxu0
        %542 = vmatprep.mubr.f32.mxu0 0.0
        %543 = vmatmul.mubr.f32.gmra.mrb[0].mxu0 %v357
        %v544 = vpop.f32.mrb[0].mxu0
        %v545 = vadd.f32 0.0, %v544
        %v546 = vpop.f32.mrb[0].mxu0
        %547 = vmatprep.mubr.f32.mxu0 0.0
        %548 = vmatmul.mubr.f32.gmra.mrb[0].mxu0 %v360
        %v549 = vpop.f32.mrb[0].mxu0
        %v550 = vadd.f32 0.0, %v549
        %v551 = vpop.f32.mrb[0].mxu0
        %552 = vmatprep.mubr.f32.mxu0 0.0
        %553 = vmatmul.mubr.f32.gmra.mrb[0].mxu0 %v363
        %v554 = vpop.f32.mrb[0].mxu0
        %v555 = vadd.f32 0.0, %v554
        %v556 = vpop.f32.mrb[0].mxu0
        %557 = vmatprep.mubr.f32.mxu0 0.0
        %558 = vmatmul.mubr.f32.gmra.mrb[0].mxu0 %v366
        %v559 = vpop.f32.mrb[0].mxu0
        %v560 = vadd.f32 0.0, %v559
        %v561 = vpop.f32.mrb[0].mxu0
        %562 = vmatprep.mubr.f32.mxu0 0.0
        %563 = vmatmul.mubr.f32.gmra.mrb[0].mxu0 %v369
        %v564 = vpop.f32.mrb[0].mxu0
        %v565 = vadd.f32 0.0, %v564
        %v566 = vpop.f32.mrb[0].mxu0
        %567 = vmatprep.mubr.f32.mxu0 0.0
        %568 = vmatmul.mubr.f32.gmra.mrb[0].mxu0 %v372
        %v569 = vpop.f32.mrb[0].mxu0
        %v570 = vadd.f32 0.0, %v569
        %v571 = vpop.f32.mrb[0].mxu0
        %572 = vmatprep.mubr.f32.mxu0 0.0
        %573 = vmatmul.mubr.f32.gmra.mrb[0].mxu0 %v375
        %v574 = vpop.f32.mrb[0].mxu0
        %v575 = vadd.f32 0.0, %v574
        %v576 = vpop.f32.mrb[0].mxu0
        %577 = vmatprep.mubr.f32.mxu0 0.0
        %578 = vmatmul.mubr.f32.gmra.mrb[0].mxu0 %v378
        %v579 = vpop.f32.mrb[0].mxu0
        %v580 = vadd.f32 0.0, %v579
        %v581 = vpop.f32.mrb[0].mxu0
        %582 = vmatprep.mubr.f32.mxu0 0.0
        %583 = vmatmul.mubr.f32.gmra.mrb[0].mxu0 %v381
        %v584 = vpop.f32.mrb[0].mxu0
        %v585 = vadd.f32 0.0, %v584
        %v586 = vpop.f32.mrb[0].mxu0
        %587 = vmatprep.mubr.f32.mxu0 0.0
        %588 = vmatmul.mubr.f32.gmra.mrb[0].mxu0 %v384
        %v589 = vpop.f32.mrb[0].mxu0
        %v590 = vadd.f32 0.0, %v589
        %v591 = vpop.f32.mrb[0].mxu0
        %592 = vmatprep.mubr.f32.mxu0 0.0
        %593 = vmatmul.mubr.f32.gmra.mrb[0].mxu0 %v387
        %v594 = vpop.f32.mrb[0].mxu0
        %v595 = vadd.f32 0.0, %v594
        %v596 = vpop.f32.mrb[0].mxu0
        %597 = vmatprep.mubr.f32.mxu0 0.0
        %598 = vmatmul.mubr.f32.gmra.mrb[0].mxu0 %v390
        %v599 = vpop.f32.mrb[0].mxu0
        %v600 = vadd.f32 0.0, %v599
        %v601 = vpop.f32.mrb[0].mxu0
        %602 = vmatprep.mubr.f32.mxu0 0.0
        %603 = vmatmul.mubr.f32.gmra.mrb[0].mxu0 %v393
        %v604 = vpop.f32.mrb[0].mxu0
        %v605 = vadd.f32 0.0, %v604
        %v606 = vpop.f32.mrb[0].mxu0
        %607 = vmatprep.mubr.f32.mxu0 0.0
        %608 = vmatmul.mubr.f32.gmra.mrb[0].mxu0 %v396
        %v609 = vpop.f32.mrb[0].mxu0
        %v610 = vadd.f32 0.0, %v609
        %v611 = vpop.f32.mrb[0].mxu0
        %612 = vmatprep.mubr.f32.mxu0 0.0
        %613 = vmatmul.mubr.f32.gmra.mrb[0].mxu0 %v399
        %v614 = vpop.f32.mrb[0].mxu0
        %v615 = vadd.f32 0.0, %v614
        %v616 = vpop.f32.mrb[0].mxu0
        %617 = vmatprep.mubr.f32.mxu0 0.0
        %618 = vmatmul.mubr.f32.gmra.mrb[0].mxu0 %v402
        %v619 = vpop.f32.mrb[0].mxu0
        %v620 = vadd.f32 0.0, %v619
        %v621 = vpop.f32.mrb[0].mxu0
        %622 = vmatprep.mubr.f32.mxu0 0.0
        %623 = vmatmul.mubr.f32.gmra.mrb[0].mxu0 %v405
        %v624 = vpop.f32.mrb[0].mxu0
        %v625 = vadd.f32 0.0, %v624
        %v626 = vpop.f32.mrb[0].mxu0
        %627 = vmatprep.mubr.f32.mxu0 0.0
        %628 = vmatmul.mubr.f32.gmra.mrb[0].mxu0 %v408
        %v629 = vpop.f32.mrb[0].mxu0
        %v630 = vadd.f32 0.0, %v629
        %v631 = vpop.f32.mrb[0].mxu0
        %632 = vmatprep.mubr.f32.mxu0 0.0
        %633 = vmatmul.mubr.f32.gmra.mrb[0].mxu0 %v411
        %v634 = vpop.f32.mrb[0].mxu0
        %v635 = vadd.f32 0.0, %v634
        %v636 = vpop.f32.mrb[0].mxu0
        %637 = vmatprep.mubr.f32.mxu0 0.0
        %638 = vmatmul.mubr.f32.gmra.mrb[0].mxu0 %v414
        %v639 = vpop.f32.mrb[0].mxu0
        %v640 = vadd.f32 0.0, %v639
        %v641 = vpop.f32.mrb[0].mxu0
        %642 = vmatprep.mubr.f32.mxu0 0.0
        %643 = vmatmul.mubr.f32.gmra.mrb[0].mxu0 %v417
        %v644 = vpop.f32.mrb[0].mxu0
        %v645 = vadd.f32 0.0, %v644
        %v646 = vpop.f32.mrb[0].mxu0
        %647 = vmatprep.mubr.f32.mxu0 0.0
        %648 = vmatmul.mubr.f32.gmra.mrb[0].mxu0 %v420
        %v649 = vpop.f32.mrb[0].mxu0
        %v650 = vadd.f32 0.0, %v649
        %v651 = vpop.f32.mrb[0].mxu0
        %652 = vmatprep.mubr.f32.mxu0 0.0
        %653 = vmatmul.mubr.f32.gmra.mrb[0].mxu0 %v423
        %v654 = vpop.f32.mrb[0].mxu0
        %v655 = vadd.f32 0.0, %v654
        %v656 = vpop.f32.mrb[0].mxu0
        %657 = vmatprep.mubr.f32.mxu0 0.0
        %658 = vmatmul.mubr.f32.gmra.mrb[0].mxu0 %v426
        %v659 = vpop.f32.mrb[0].mxu0
        %v660 = vadd.f32 0.0, %v659
        %v661 = vpop.f32.mrb[0].mxu0
        %662 = vmatprep.mubr.f32.mxu0 0.0
        %663 = vmatmul.mubr.f32.gmra.mrb[0].mxu0 %v429
        %v664 = vpop.f32.mrb[0].mxu0
        %v665 = vadd.f32 0.0, %v664
        %v666 = vpop.f32.mrb[0].mxu0
        %667 = vmatprep.mubr.f32.mxu0 0.0
        %668 = vmatmul.mubr.f32.gmra.mrb[0].mxu0 %v432
        %v669 = vpop.f32.mrb[0].mxu0
        %v670 = vadd.f32 0.0, %v669
        %v671 = vpop.f32.mrb[0].mxu0
        %672 = vmatprep.mubr.f32.mxu0 0.0
        %673 = vmatmul.mubr.f32.gmra.mrb[0].mxu0 %v435
        %v674 = vpop.f32.mrb[0].mxu0
        %v675 = vadd.f32 0.0, %v674
        %v676 = vpop.f32.mrb[0].mxu0
        %677 = vmatprep.mubr.f32.mxu0 0.0
        %678 = vmatmul.mubr.f32.gmra.mrb[0].mxu0 %v438
        %v679 = vpop.f32.mrb[0].mxu0
        %v680 = vadd.f32 0.0, %v679
        %v681 = vpop.f32.mrb[0].mxu0
        %682 = vmatprep.mubr.f32.mxu0 0.0
        %683 = vmatmul.mubr.f32.gmra.mrb[0].mxu0 %v441
        %v684 = vpop.f32.mrb[0].mxu0
        %v685 = vadd.f32 0.0, %v684
        %v686 = vpop.f32.mrb[0].mxu0
        %687 = vmatprep.mubr.f32.mxu0 0.0
        %688 = vmatmul.mubr.f32.gmra.mrb[0].mxu0 %v444
        %v689 = vpop.f32.mrb[0].mxu0
        %v690 = vadd.f32 0.0, %v689
        %v691 = vpop.f32.mrb[0].mxu0
        %692 = vmatprep.mubr.f32.mxu0 0.0
        %693 = vmatmul.mubr.f32.gmra.mrb[0].mxu0 %v447
        %v694 = vpop.f32.mrb[0].mxu0
        %v695 = vadd.f32 0.0, %v694
        %v696 = vpop.f32.mrb[0].mxu0
        %697 = vmatprep.mubr.f32.mxu0 0.0
        %698 = vmatmul.mubr.f32.gmra.mrb[0].mxu0 %v450
        %v699 = vpop.f32.mrb[0].mxu0
        %v700 = vadd.f32 0.0, %v699
        %v701 = vpop.f32.mrb[0].mxu0
        %702 = vmatprep.mubr.f32.mxu0 0.0
        %703 = vmatmul.mubr.f32.gmra.mrb[0].mxu0 %v453
        %v704 = vpop.f32.mrb[0].mxu0
        %v705 = vadd.f32 0.0, %v704
        %v706 = vpop.f32.mrb[0].mxu0
        %707 = vmatprep.mubr.f32.mxu0 0.0
        %708 = vmatmul.mubr.f32.gmra.mrb[0].mxu0 %v456
        %v709 = vpop.f32.mrb[0].mxu0
        %v710 = vadd.f32 0.0, %v709
        %v711 = vpop.f32.mrb[0].mxu0
        %712 = vmatprep.mubr.f32.mxu0 0.0
        %713 = vmatmul.mubr.f32.gmra.mrb[0].mxu0 %v459
        %v714 = vpop.f32.mrb[0].mxu0
        %v715 = vadd.f32 0.0, %v714
        %v716 = vpop.f32.mrb[0].mxu0
        %717 = vmatprep.mubr.f32.mxu0 0.0
        %718 = vmatmul.mubr.f32.gmra.mrb[0].mxu0 %v462
        %v719 = vpop.f32.mrb[0].mxu0
        %v720 = vadd.f32 0.0, %v719
        %v721 = vpop.f32.mrb[0].mxu0
        %722 = vmatprep.mubr.f32.mxu0 0.0
        %723 = vmatmul.mubr.f32.gmra.mrb[0].mxu0 %v465
        %v724 = vpop.f32.mrb[0].mxu0
        %v725 = vadd.f32 0.0, %v724
        %v726 = vpop.f32.mrb[0].mxu0
        %727 = vmatprep.mubr.f32.mxu0 0.0
        %728 = vmatmul.mubr.f32.gmra.mrb[0].mxu0 %v468
        %v729 = vpop.f32.mrb[0].mxu0
        %v730 = vadd.f32 0.0, %v729
        %v731 = vpop.f32.mrb[0].mxu0
        %732 = vmatprep.mubr.f32.mxu0 0.0
        %733 = vmatmul.mubr.f32.gmra.mrb[0].mxu0 %v471
        %v734 = vpop.f32.mrb[0].mxu0
        %v735 = vadd.f32 0.0, %v734
        %v736 = vpop.f32.mrb[0].mxu0
        %737 = vdwg.mxu0
        %v738 = vlaneseq
        %v739 = vand.u32 %v738, 127
        %vm740 = vcmp.lt.s32.totalorder %v739, 16
        %v741 = vld [vmem:[#allocation8] sm:$0xff]
        %v742 = vld [vmem:[#allocation8 + $0x8] sm:$0xff]
        %v744 = vsel %vm352, %v741, 0
        %v747 = vsel %vm352, %v742, 0
        %749 = vmatprep.subr.mxu0 0.0
        %750 = vmatpush1.msra.mxu0 %v540
        %751 = vmatprep.subr.mxu0 0.0
        %752 = vmatpush1.msra.mxu0 %v545
        %753 = vmatprep.subr.mxu0 0.0
        %754 = vmatpush1.msra.mxu0 0.0
        %755 = vmatprep.subr.mxu0 0.0
        %756 = vmatpush1.msra.mxu0 0.0
        %757 = vmatprep.subr.mxu0 0.0
        %758 = vmatpush1.msra.mxu0 0.0
        %759 = vmatprep.subr.mxu0 0.0
        %760 = vmatpush1.msra.mxu0 0.0
        %761 = vmatprep.subr.mxu0 0.0
        %762 = vmatpush1.msra.mxu0 0.0
        %763 = vmatprep.subr.mxu0 0.0
        %764 = vmatpush1.msra.mxu0 0.0
        %765 = vmatprep.subr.mxu0 0.0
        %766 = vmatpush1.msra.mxu0 0.0
        %767 = vmatprep.subr.mxu0 0.0
        %768 = vmatpush1.msra.mxu0 0.0
        %769 = vmatprep.subr.mxu0 0.0
        %770 = vmatpush1.msra.mxu0 0.0
        %771 = vmatprep.subr.mxu0 0.0
        %772 = vmatpush1.msra.mxu0 0.0
        %773 = vmatprep.subr.mxu0 0.0
        %774 = vmatpush1.msra.mxu0 0.0
        %775 = vmatprep.subr.mxu0 0.0
        %776 = vmatpush1.msra.mxu0 0.0
        %777 = vmatprep.subr.mxu0 0.0
        %778 = vmatpush1.msra.mxu0 0.0
        %779 = vmatprep.subr.mxu0 0.0
        %780 = vmatpush1.msra.mxu0 0.0
        %781 = vmatprep.subr.mxu0 0.0
        %782 = vmatpush1.msra.mxu0 0.0
        %783 = vmatprep.subr.mxu0 0.0
        %784 = vmatpush1.msra.mxu0 0.0
        %785 = vmatprep.subr.mxu0 0.0
        %786 = vmatpush1.msra.mxu0 0.0
        %787 = vmatprep.subr.mxu0 0.0
        %788 = vmatpush1.msra.mxu0 0.0
        %789 = vmatprep.subr.mxu0 0.0
        %790 = vmatpush1.msra.mxu0 0.0
        %791 = vmatprep.subr.mxu0 0.0
        %792 = vmatpush1.msra.mxu0 0.0
        %793 = vmatprep.subr.mxu0 0.0
        %794 = vmatpush1.msra.mxu0 0.0
        %795 = vmatprep.subr.mxu0 0.0
        %796 = vmatpush1.msra.mxu0 0.0
        %797 = vmatprep.subr.mxu0 0.0
        %798 = vmatpush1.msra.mxu0 0.0
        %799 = vmatprep.subr.mxu0 0.0
        %800 = vmatpush1.msra.mxu0 0.0
        %801 = vmatprep.subr.mxu0 0.0
        %802 = vmatpush1.msra.mxu0 0.0
        %803 = vmatprep.subr.mxu0 0.0
        %804 = vmatpush1.msra.mxu0 0.0
        %805 = vmatprep.subr.mxu0 0.0
        %806 = vmatpush1.msra.mxu0 0.0
        %807 = vmatprep.subr.mxu0 0.0
        %808 = vmatpush1.msra.mxu0 0.0
        %809 = vmatprep.subr.mxu0 0.0
        %810 = vmatpush1.msra.mxu0 0.0
        %811 = vmatprep.subr.mxu0 0.0
        %812 = vmatpush1.msra.mxu0 0.0
        %813 = vmatprep.mubr.f32.mxu0 0.0
        %814 = vmatmul.mubr.f32.gmra.mrb[0].mxu0 %v744
        %v815 = vpop.f32.mrb[0].mxu0
        %v816 = vadd.f32 0.0, %v815
        %v817 = vpop.f32.mrb[0].mxu0
        %818 = vmatprep.mubr.f32.mxu0 0.0
        %819 = vmatmul.mubr.f32.gmra.mrb[0].mxu0 %v747
        %v820 = vpop.f32.mrb[0].mxu0
        %v821 = vadd.f32 0.0, %v820
        %v822 = vpop.f32.mrb[0].mxu0
        %823 = vdwg.mxu0
        %824 = vmatprep.subr.mxu0 0.0
        %825 = vmatpush1.msra.mxu0 %v580
        %826 = vmatprep.subr.mxu0 0.0
        %827 = vmatpush1.msra.mxu0 %v585
        %828 = vmatprep.subr.mxu0 0.0
        %829 = vmatpush1.msra.mxu0 0.0
        %830 = vmatprep.subr.mxu0 0.0
        %831 = vmatpush1.msra.mxu0 0.0
        %832 = vmatprep.subr.mxu0 0.0
        %833 = vmatpush1.msra.mxu0 0.0
        %834 = vmatprep.subr.mxu0 0.0
        %835 = vmatpush1.msra.mxu0 0.0
        %836 = vmatprep.subr.mxu0 0.0
        %837 = vmatpush1.msra.mxu0 0.0
        %838 = vmatprep.subr.mxu0 0.0
        %839 = vmatpush1.msra.mxu0 0.0
        %840 = vmatprep.subr.mxu0 0.0
        %841 = vmatpush1.msra.mxu0 0.0
        %842 = vmatprep.subr.mxu0 0.0
        %843 = vmatpush1.msra.mxu0 0.0
        %844 = vmatprep.subr.mxu0 0.0
        %845 = vmatpush1.msra.mxu0 0.0
        %846 = vmatprep.subr.mxu0 0.0
        %847 = vmatpush1.msra.mxu0 0.0
        %848 = vmatprep.subr.mxu0 0.0
        %849 = vmatpush1.msra.mxu0 0.0
        %850 = vmatprep.subr.mxu0 0.0
        %851 = vmatpush1.msra.mxu0 0.0
        %852 = vmatprep.subr.mxu0 0.0
        %853 = vmatpush1.msra.mxu0 0.0
        %854 = vmatprep.subr.mxu0 0.0
        %855 = vmatpush1.msra.mxu0 0.0
        %856 = vmatprep.subr.mxu0 0.0
        %857 = vmatpush1.msra.mxu0 0.0
        %858 = vmatprep.subr.mxu0 0.0
        %859 = vmatpush1.msra.mxu0 0.0
        %860 = vmatprep.subr.mxu0 0.0
        %861 = vmatpush1.msra.mxu0 0.0
        %862 = vmatprep.subr.mxu0 0.0
        %863 = vmatpush1.msra.mxu0 0.0
        %864 = vmatprep.subr.mxu0 0.0
        %865 = vmatpush1.msra.mxu0 0.0
        %866 = vmatprep.subr.mxu0 0.0
        %867 = vmatpush1.msra.mxu0 0.0
        %868 = vmatprep.subr.mxu0 0.0
        %869 = vmatpush1.msra.mxu0 0.0
        %870 = vmatprep.subr.mxu0 0.0
        %871 = vmatpush1.msra.mxu0 0.0
        %872 = vmatprep.subr.mxu0 0.0
        %873 = vmatpush1.msra.mxu0 0.0
        %874 = vmatprep.subr.mxu0 0.0
        %875 = vmatpush1.msra.mxu0 0.0
        %876 = vmatprep.subr.mxu0 0.0
        %877 = vmatpush1.msra.mxu0 0.0
        %878 = vmatprep.subr.mxu0 0.0
        %879 = vmatpush1.msra.mxu0 0.0
        %880 = vmatprep.subr.mxu0 0.0
        %881 = vmatpush1.msra.mxu0 0.0
        %882 = vmatprep.subr.mxu0 0.0
        %883 = vmatpush1.msra.mxu0 0.0
        %884 = vmatprep.subr.mxu0 0.0
        %885 = vmatpush1.msra.mxu0 0.0
        %886 = vmatprep.subr.mxu0 0.0
        %887 = vmatpush1.msra.mxu0 0.0
        %888 = vmatprep.mubr.f32.mxu0 0.0
        %889 = vmatmul.mubr.f32.gmra.mrb[0].mxu0 %v744
        %v890 = vpop.f32.mrb[0].mxu0
        %v891 = vadd.f32 0.0, %v890
        %v892 = vpop.f32.mrb[0].mxu0
        %893 = vmatprep.mubr.f32.mxu0 0.0
        %894 = vmatmul.mubr.f32.gmra.mrb[0].mxu0 %v747
        %v895 = vpop.f32.mrb[0].mxu0
        %v896 = vadd.f32 0.0, %v895
        %v897 = vpop.f32.mrb[0].mxu0
        %898 = vdwg.mxu0
        %899 = vmatprep.subr.mxu0 0.0
        %900 = vmatpush1.msra.mxu0 %v620
        %901 = vmatprep.subr.mxu0 0.0
        %902 = vmatpush1.msra.mxu0 %v625
        %903 = vmatprep.subr.mxu0 0.0
        %904 = vmatpush1.msra.mxu0 0.0
        %905 = vmatprep.subr.mxu0 0.0
        %906 = vmatpush1.msra.mxu0 0.0
        %907 = vmatprep.subr.mxu0 0.0
        %908 = vmatpush1.msra.mxu0 0.0
        %909 = vmatprep.subr.mxu0 0.0
        %910 = vmatpush1.msra.mxu0 0.0
        %911 = vmatprep.subr.mxu0 0.0
        %912 = vmatpush1.msra.mxu0 0.0
        %913 = vmatprep.subr.mxu0 0.0
        %914 = vmatpush1.msra.mxu0 0.0
        %915 = vmatprep.subr.mxu0 0.0
        %916 = vmatpush1.msra.mxu0 0.0
        %917 = vmatprep.subr.mxu0 0.0
        %918 = vmatpush1.msra.mxu0 0.0
        %919 = vmatprep.subr.mxu0 0.0
        %920 = vmatpush1.msra.mxu0 0.0
        %921 = vmatprep.subr.mxu0 0.0
        %922 = vmatpush1.msra.mxu0 0.0
        %923 = vmatprep.subr.mxu0 0.0
        %924 = vmatpush1.msra.mxu0 0.0
        %925 = vmatprep.subr.mxu0 0.0
        %926 = vmatpush1.msra.mxu0 0.0
        %927 = vmatprep.subr.mxu0 0.0
        %928 = vmatpush1.msra.mxu0 0.0
        %929 = vmatprep.subr.mxu0 0.0
        %930 = vmatpush1.msra.mxu0 0.0
        %931 = vmatprep.subr.mxu0 0.0
        %932 = vmatpush1.msra.mxu0 0.0
        %933 = vmatprep.subr.mxu0 0.0
        %934 = vmatpush1.msra.mxu0 0.0
        %935 = vmatprep.subr.mxu0 0.0
        %936 = vmatpush1.msra.mxu0 0.0
        %937 = vmatprep.subr.mxu0 0.0
        %938 = vmatpush1.msra.mxu0 0.0
        %939 = vmatprep.subr.mxu0 0.0
        %940 = vmatpush1.msra.mxu0 0.0
        %941 = vmatprep.subr.mxu0 0.0
        %942 = vmatpush1.msra.mxu0 0.0
        %943 = vmatprep.subr.mxu0 0.0
        %944 = vmatpush1.msra.mxu0 0.0
        %945 = vmatprep.subr.mxu0 0.0
        %946 = vmatpush1.msra.mxu0 0.0
        %947 = vmatprep.subr.mxu0 0.0
        %948 = vmatpush1.msra.mxu0 0.0
        %949 = vmatprep.subr.mxu0 0.0
        %950 = vmatpush1.msra.mxu0 0.0
        %951 = vmatprep.subr.mxu0 0.0
        %952 = vmatpush1.msra.mxu0 0.0
        %953 = vmatprep.subr.mxu0 0.0
        %954 = vmatpush1.msra.mxu0 0.0
        %955 = vmatprep.subr.mxu0 0.0
        %956 = vmatpush1.msra.mxu0 0.0
        %957 = vmatprep.subr.mxu0 0.0
        %958 = vmatpush1.msra.mxu0 0.0
        %959 = vmatprep.subr.mxu0 0.0
        %960 = vmatpush1.msra.mxu0 0.0
        %961 = vmatprep.subr.mxu0 0.0
        %962 = vmatpush1.msra.mxu0 0.0
        %963 = vmatprep.mubr.f32.mxu0 0.0
        %964 = vmatmul.mubr.f32.gmra.mrb[0].mxu0 %v744
        %v965 = vpop.f32.mrb[0].mxu0
        %v966 = vadd.f32 0.0, %v965
        %v967 = vpop.f32.mrb[0].mxu0
        %968 = vmatprep.mubr.f32.mxu0 0.0
        %969 = vmatmul.mubr.f32.gmra.mrb[0].mxu0 %v747
        %v970 = vpop.f32.mrb[0].mxu0
        %v971 = vadd.f32 0.0, %v970
        %v972 = vpop.f32.mrb[0].mxu0
        %973 = vdwg.mxu0
        %974 = vmatprep.subr.mxu0 0.0
        %975 = vmatpush1.msra.mxu0 %v660
        %976 = vmatprep.subr.mxu0 0.0
        %977 = vmatpush1.msra.mxu0 %v665
        %978 = vmatprep.subr.mxu0 0.0
        %979 = vmatpush1.msra.mxu0 0.0
        %980 = vmatprep.subr.mxu0 0.0
        %981 = vmatpush1.msra.mxu0 0.0
        %982 = vmatprep.subr.mxu0 0.0
        %983 = vmatpush1.msra.mxu0 0.0
        %984 = vmatprep.subr.mxu0 0.0
        %985 = vmatpush1.msra.mxu0 0.0
        %986 = vmatprep.subr.mxu0 0.0
        %987 = vmatpush1.msra.mxu0 0.0
        %988 = vmatprep.subr.mxu0 0.0
        %989 = vmatpush1.msra.mxu0 0.0
        %990 = vmatprep.subr.mxu0 0.0
        %991 = vmatpush1.msra.mxu0 0.0
        %992 = vmatprep.subr.mxu0 0.0
        %993 = vmatpush1.msra.mxu0 0.0
        %994 = vmatprep.subr.mxu0 0.0
        %995 = vmatpush1.msra.mxu0 0.0
        %996 = vmatprep.subr.mxu0 0.0
        %997 = vmatpush1.msra.mxu0 0.0
        %998 = vmatprep.subr.mxu0 0.0
        %999 = vmatpush1.msra.mxu0 0.0
        %1000 = vmatprep.subr.mxu0 0.0
        %1001 = vmatpush1.msra.mxu0 0.0
        %1002 = vmatprep.subr.mxu0 0.0
        %1003 = vmatpush1.msra.mxu0 0.0
        %1004 = vmatprep.subr.mxu0 0.0
        %1005 = vmatpush1.msra.mxu0 0.0
        %1006 = vmatprep.subr.mxu0 0.0
        %1007 = vmatpush1.msra.mxu0 0.0
        %1008 = vmatprep.subr.mxu0 0.0
        %1009 = vmatpush1.msra.mxu0 0.0
        %1010 = vmatprep.subr.mxu0 0.0
        %1011 = vmatpush1.msra.mxu0 0.0
        %1012 = vmatprep.subr.mxu0 0.0
        %1013 = vmatpush1.msra.mxu0 0.0
        %1014 = vmatprep.subr.mxu0 0.0
        %1015 = vmatpush1.msra.mxu0 0.0
        %1016 = vmatprep.subr.mxu0 0.0
        %1017 = vmatpush1.msra.mxu0 0.0
        %1018 = vmatprep.subr.mxu0 0.0
        %1019 = vmatpush1.msra.mxu0 0.0
        %1020 = vmatprep.subr.mxu0 0.0
        %1021 = vmatpush1.msra.mxu0 0.0
        %1022 = vmatprep.subr.mxu0 0.0
        %1023 = vmatpush1.msra.mxu0 0.0
        %1024 = vmatprep.subr.mxu0 0.0
        %1025 = vmatpush1.msra.mxu0 0.0
        %1026 = vmatprep.subr.mxu0 0.0
        %1027 = vmatpush1.msra.mxu0 0.0
        %1028 = vmatprep.subr.mxu0 0.0
        %1029 = vmatpush1.msra.mxu0 0.0
        %1030 = vmatprep.subr.mxu0 0.0
        %1031 = vmatpush1.msra.mxu0 0.0
        %1032 = vmatprep.subr.mxu0 0.0
        %1033 = vmatpush1.msra.mxu0 0.0
        %1034 = vmatprep.subr.mxu0 0.0
        %1035 = vmatpush1.msra.mxu0 0.0
        %1036 = vmatprep.subr.mxu0 0.0
        %1037 = vmatpush1.msra.mxu0 0.0
        %1038 = vmatprep.mubr.f32.mxu0 0.0
        %1039 = vmatmul.mubr.f32.gmra.mrb[0].mxu0 %v744
        %v1040 = vpop.f32.mrb[0].mxu0
        %v1041 = vadd.f32 0.0, %v1040
        %v1042 = vpop.f32.mrb[0].mxu0
        %1043 = vmatprep.mubr.f32.mxu0 0.0
        %1044 = vmatmul.mubr.f32.gmra.mrb[0].mxu0 %v747
        %v1045 = vpop.f32.mrb[0].mxu0
        %v1046 = vadd.f32 0.0, %v1045
        %v1047 = vpop.f32.mrb[0].mxu0
        %1048 = vdwg.mxu0
        %1049 = vmatprep.subr.mxu0 0.0
        %1050 = vmatpush1.msra.mxu0 %v700
        %1051 = vmatprep.subr.mxu0 0.0
        %1052 = vmatpush1.msra.mxu0 %v705
        %1053 = vmatprep.subr.mxu0 0.0
        %1054 = vmatpush1.msra.mxu0 0.0
        %1055 = vmatprep.subr.mxu0 0.0
        %1056 = vmatpush1.msra.mxu0 0.0
        %1057 = vmatprep.subr.mxu0 0.0
        %1058 = vmatpush1.msra.mxu0 0.0
        %1059 = vmatprep.subr.mxu0 0.0
        %1060 = vmatpush1.msra.mxu0 0.0
        %1061 = vmatprep.subr.mxu0 0.0
        %1062 = vmatpush1.msra.mxu0 0.0
        %1063 = vmatprep.subr.mxu0 0.0
        %1064 = vmatpush1.msra.mxu0 0.0
        %1065 = vmatprep.subr.mxu0 0.0
        %1066 = vmatpush1.msra.mxu0 0.0
        %1067 = vmatprep.subr.mxu0 0.0
        %1068 = vmatpush1.msra.mxu0 0.0
        %1069 = vmatprep.subr.mxu0 0.0
        %1070 = vmatpush1.msra.mxu0 0.0
        %1071 = vmatprep.subr.mxu0 0.0
        %1072 = vmatpush1.msra.mxu0 0.0
        %1073 = vmatprep.subr.mxu0 0.0
        %1074 = vmatpush1.msra.mxu0 0.0
        %1075 = vmatprep.subr.mxu0 0.0
        %1076 = vmatpush1.msra.mxu0 0.0
        %1077 = vmatprep.subr.mxu0 0.0
        %1078 = vmatpush1.msra.mxu0 0.0
        %1079 = vmatprep.subr.mxu0 0.0
        %1080 = vmatpush1.msra.mxu0 0.0
        %1081 = vmatprep.subr.mxu0 0.0
        %1082 = vmatpush1.msra.mxu0 0.0
        %1083 = vmatprep.subr.mxu0 0.0
        %1084 = vmatpush1.msra.mxu0 0.0
        %1085 = vmatprep.subr.mxu0 0.0
        %1086 = vmatpush1.msra.mxu0 0.0
        %1087 = vmatprep.subr.mxu0 0.0
        %1088 = vmatpush1.msra.mxu0 0.0
        %1089 = vmatprep.subr.mxu0 0.0
        %1090 = vmatpush1.msra.mxu0 0.0
        %1091 = vmatprep.subr.mxu0 0.0
        %1092 = vmatpush1.msra.mxu0 0.0
        %1093 = vmatprep.subr.mxu0 0.0
        %1094 = vmatpush1.msra.mxu0 0.0
        %1095 = vmatprep.subr.mxu0 0.0
        %1096 = vmatpush1.msra.mxu0 0.0
        %1097 = vmatprep.subr.mxu0 0.0
        %1098 = vmatpush1.msra.mxu0 0.0
        %1099 = vmatprep.subr.mxu0 0.0
        %1100 = vmatpush1.msra.mxu0 0.0
        %1101 = vmatprep.subr.mxu0 0.0
        %1102 = vmatpush1.msra.mxu0 0.0
        %1103 = vmatprep.subr.mxu0 0.0
        %1104 = vmatpush1.msra.mxu0 0.0
        %1105 = vmatprep.subr.mxu0 0.0
        %1106 = vmatpush1.msra.mxu0 0.0
        %1107 = vmatprep.subr.mxu0 0.0
        %1108 = vmatpush1.msra.mxu0 0.0
        %1109 = vmatprep.subr.mxu0 0.0
        %1110 = vmatpush1.msra.mxu0 0.0
        %1111 = vmatprep.subr.mxu0 0.0
        %1112 = vmatpush1.msra.mxu0 0.0
        %1113 = vmatprep.mubr.f32.mxu0 0.0
        %1114 = vmatmul.mubr.f32.gmra.mrb[0].mxu0 %v744
        %v1115 = vpop.f32.mrb[0].mxu0
        %v1116 = vadd.f32 0.0, %v1115
        %v1117 = vpop.f32.mrb[0].mxu0
        %1118 = vmatprep.mubr.f32.mxu0 0.0
        %1119 = vmatmul.mubr.f32.gmra.mrb[0].mxu0 %v747
        %v1120 = vpop.f32.mrb[0].mxu0
        %v1121 = vadd.f32 0.0, %v1120
        %v1122 = vpop.f32.mrb[0].mxu0
        %1123 = vdwg.mxu0
        %v1124 = vmul.f32 %v816, %v816
        %v1125 = vmul.f32 %v821, %v821
        %v1126 = vmul.f32 %v891, %v891
        %v1127 = vmul.f32 %v896, %v896
        %v1128 = vmul.f32 %v816, %v891
        %v1129 = vmul.f32 %v821, %v896
        %v1130 = vsub.f32 %v966, %v1124
        %v1131 = vsub.f32 %v971, %v1125
        %v1132 = vsub.f32 %v1041, %v1126
        %v1133 = vsub.f32 %v1046, %v1127
        %v1134 = vsub.f32 %v1116, %v1128
        %v1135 = vsub.f32 %v1121, %v1129
        %v1136 = vmul.f32 %v1128, 2.0
        %v1137 = vmul.f32 %v1129, 2.0
        %v1138 = vadd.f32 %v1136, 0.0001
        %v1139 = vadd.f32 %v1137, 0.0001
        %v1140 = vmul.f32 %v1134, 2.0
        %v1141 = vmul.f32 %v1135, 2.0
        %v1142 = vadd.f32 %v1140, 0.0009
        %v1143 = vadd.f32 %v1141, 0.0009
        %v1144 = vmul.f32 %v1138, %v1142
        %v1145 = vmul.f32 %v1139, %v1143
        %v1146 = vadd.f32 %v1124, %v1126
        %v1147 = vadd.f32 %v1125, %v1127
        %v1148 = vadd.f32 %v1146, 0.0001
        %v1149 = vadd.f32 %v1147, 0.0001
        %v1150 = vadd.f32 %v1130, %v1132
        %v1151 = vadd.f32 %v1131, %v1133
        %v1152 = vadd.f32 %v1150, 0.0009
        %v1153 = vadd.f32 %v1151, 0.0009
        %v1154 = vmul.f32 %v1148, %v1152
        %v1155 = vmul.f32 %v1149, %v1153
        %v1156 = vrcp.pop %v1154
        %v1157 = vrcp.pop %v1155
        %v1158 = vmul.f32 %v1154, %v1156
        %v1159 = vmul.f32 %v1155, %v1157
        %v1160 = vsub.f32 2.0, %v1158
        %v1161 = vsub.f32 2.0, %v1159
        %v1162 = vmul.f32 %v1156, %v1160
        %v1163 = vmul.f32 %v1157, %v1161
        %v1164 = vmul.f32 %v1144, %v1162
        %v1165 = vmul.f32 %v1145, %v1163
        %v1166 = vsel %vm740, %v1164, 0.0
        %v1167 = vsel %vm740, %v1165, 0.0
        %v1168 = vadd.f32 %v1166, %v1167
        %v1169 = vrot.slane %v1168, 4
        %v1170 = vadd.f32 %v1168, %v1169
        %v1171 = vrot.slane %v1170, 2
        %v1172 = vadd.f32 %v1170, %v1171
        %v1173 = vrot.slane %v1172, 1
        %v1174 = vadd.f32 %v1172, %v1173
        %1175 = vmatprep.subr.mxu0 0.0
        %1176 = vmatpush1.msra.mxu0 %v550
        %1177 = vmatprep.subr.mxu0 0.0
        %1178 = vmatpush1.msra.mxu0 %v555
        %1179 = vmatprep.subr.mxu0 0.0
        %1180 = vmatpush1.msra.mxu0 0.0
        %1181 = vmatprep.subr.mxu0 0.0
        %1182 = vmatpush1.msra.mxu0 0.0
        %1183 = vmatprep.subr.mxu0 0.0
        %1184 = vmatpush1.msra.mxu0 0.0
        %1185 = vmatprep.subr.mxu0 0.0
        %1186 = vmatpush1.msra.mxu0 0.0
        %1187 = vmatprep.subr.mxu0 0.0
        %1188 = vmatpush1.msra.mxu0 0.0
        %1189 = vmatprep.subr.mxu0 0.0
        %1190 = vmatpush1.msra.mxu0 0.0
        %1191 = vmatprep.subr.mxu0 0.0
        %1192 = vmatpush1.msra.mxu0 0.0
        %1193 = vmatprep.subr.mxu0 0.0
        %1194 = vmatpush1.msra.mxu0 0.0
        %1195 = vmatprep.subr.mxu0 0.0
        %1196 = vmatpush1.msra.mxu0 0.0
        %1197 = vmatprep.subr.mxu0 0.0
        %1198 = vmatpush1.msra.mxu0 0.0
        %1199 = vmatprep.subr.mxu0 0.0
        %1200 = vmatpush1.msra.mxu0 0.0
        %1201 = vmatprep.subr.mxu0 0.0
        %1202 = vmatpush1.msra.mxu0 0.0
        %1203 = vmatprep.subr.mxu0 0.0
        %1204 = vmatpush1.msra.mxu0 0.0
        %1205 = vmatprep.subr.mxu0 0.0
        %1206 = vmatpush1.msra.mxu0 0.0
        %1207 = vmatprep.subr.mxu0 0.0
        %1208 = vmatpush1.msra.mxu0 0.0
        %1209 = vmatprep.subr.mxu0 0.0
        %1210 = vmatpush1.msra.mxu0 0.0
        %1211 = vmatprep.subr.mxu0 0.0
        %1212 = vmatpush1.msra.mxu0 0.0
        %1213 = vmatprep.subr.mxu0 0.0
        %1214 = vmatpush1.msra.mxu0 0.0
        %1215 = vmatprep.subr.mxu0 0.0
        %1216 = vmatpush1.msra.mxu0 0.0
        %1217 = vmatprep.subr.mxu0 0.0
        %1218 = vmatpush1.msra.mxu0 0.0
        %1219 = vmatprep.subr.mxu0 0.0
        %1220 = vmatpush1.msra.mxu0 0.0
        %1221 = vmatprep.subr.mxu0 0.0
        %1222 = vmatpush1.msra.mxu0 0.0
        %1223 = vmatprep.subr.mxu0 0.0
        %1224 = vmatpush1.msra.mxu0 0.0
        %1225 = vmatprep.subr.mxu0 0.0
        %1226 = vmatpush1.msra.mxu0 0.0
        %1227 = vmatprep.subr.mxu0 0.0
        %1228 = vmatpush1.msra.mxu0 0.0
        %1229 = vmatprep.subr.mxu0 0.0
        %1230 = vmatpush1.msra.mxu0 0.0
        %1231 = vmatprep.subr.mxu0 0.0
        %1232 = vmatpush1.msra.mxu0 0.0
        %1233 = vmatprep.subr.mxu0 0.0
        %1234 = vmatpush1.msra.mxu0 0.0
        %1235 = vmatprep.subr.mxu0 0.0
        %1236 = vmatpush1.msra.mxu0 0.0
        %1237 = vmatprep.subr.mxu0 0.0
        %1238 = vmatpush1.msra.mxu0 0.0
        %1239 = vmatprep.mubr.f32.mxu0 0.0
        %1240 = vmatmul.mubr.f32.gmra.mrb[0].mxu0 %v744
        %v1241 = vpop.f32.mrb[0].mxu0
        %v1242 = vadd.f32 0.0, %v1241
        %v1243 = vpop.f32.mrb[0].mxu0
        %1244 = vmatprep.mubr.f32.mxu0 0.0
        %1245 = vmatmul.mubr.f32.gmra.mrb[0].mxu0 %v747
        %v1246 = vpop.f32.mrb[0].mxu0
        %v1247 = vadd.f32 0.0, %v1246
        %v1248 = vpop.f32.mrb[0].mxu0
        %1249 = vdwg.mxu0
        %1250 = vmatprep.subr.mxu0 0.0
        %1251 = vmatpush1.msra.mxu0 %v590
        %1252 = vmatprep.subr.mxu0 0.0
        %1253 = vmatpush1.msra.mxu0 %v595
        %1254 = vmatprep.subr.mxu0 0.0
        %1255 = vmatpush1.msra.mxu0 0.0
        %1256 = vmatprep.subr.mxu0 0.0
        %1257 = vmatpush1.msra.mxu0 0.0
        %1258 = vmatprep.subr.mxu0 0.0
        %1259 = vmatpush1.msra.mxu0 0.0
        %1260 = vmatprep.subr.mxu0 0.0
        %1261 = vmatpush1.msra.mxu0 0.0
        %1262 = vmatprep.subr.mxu0 0.0
        %1263 = vmatpush1.msra.mxu0 0.0
        %1264 = vmatprep.subr.mxu0 0.0
        %1265 = vmatpush1.msra.mxu0 0.0
        %1266 = vmatprep.subr.mxu0 0.0
        %1267 = vmatpush1.msra.mxu0 0.0
        %1268 = vmatprep.subr.mxu0 0.0
        %1269 = vmatpush1.msra.mxu0 0.0
        %1270 = vmatprep.subr.mxu0 0.0
        %1271 = vmatpush1.msra.mxu0 0.0
        %1272 = vmatprep.subr.mxu0 0.0
        %1273 = vmatpush1.msra.mxu0 0.0
        %1274 = vmatprep.subr.mxu0 0.0
        %1275 = vmatpush1.msra.mxu0 0.0
        %1276 = vmatprep.subr.mxu0 0.0
        %1277 = vmatpush1.msra.mxu0 0.0
        %1278 = vmatprep.subr.mxu0 0.0
        %1279 = vmatpush1.msra.mxu0 0.0
        %1280 = vmatprep.subr.mxu0 0.0
        %1281 = vmatpush1.msra.mxu0 0.0
        %1282 = vmatprep.subr.mxu0 0.0
        %1283 = vmatpush1.msra.mxu0 0.0
        %1284 = vmatprep.subr.mxu0 0.0
        %1285 = vmatpush1.msra.mxu0 0.0
        %1286 = vmatprep.subr.mxu0 0.0
        %1287 = vmatpush1.msra.mxu0 0.0
        %1288 = vmatprep.subr.mxu0 0.0
        %1289 = vmatpush1.msra.mxu0 0.0
        %1290 = vmatprep.subr.mxu0 0.0
        %1291 = vmatpush1.msra.mxu0 0.0
        %1292 = vmatprep.subr.mxu0 0.0
        %1293 = vmatpush1.msra.mxu0 0.0
        %1294 = vmatprep.subr.mxu0 0.0
        %1295 = vmatpush1.msra.mxu0 0.0
        %1296 = vmatprep.subr.mxu0 0.0
        %1297 = vmatpush1.msra.mxu0 0.0
        %1298 = vmatprep.subr.mxu0 0.0
        %1299 = vmatpush1.msra.mxu0 0.0
        %1300 = vmatprep.subr.mxu0 0.0
        %1301 = vmatpush1.msra.mxu0 0.0
        %1302 = vmatprep.subr.mxu0 0.0
        %1303 = vmatpush1.msra.mxu0 0.0
        %1304 = vmatprep.subr.mxu0 0.0
        %1305 = vmatpush1.msra.mxu0 0.0
        %1306 = vmatprep.subr.mxu0 0.0
        %1307 = vmatpush1.msra.mxu0 0.0
        %1308 = vmatprep.subr.mxu0 0.0
        %1309 = vmatpush1.msra.mxu0 0.0
        %1310 = vmatprep.subr.mxu0 0.0
        %1311 = vmatpush1.msra.mxu0 0.0
        %1312 = vmatprep.subr.mxu0 0.0
        %1313 = vmatpush1.msra.mxu0 0.0
        %1314 = vmatprep.mubr.f32.mxu0 0.0
        %1315 = vmatmul.mubr.f32.gmra.mrb[0].mxu0 %v744
        %v1316 = vpop.f32.mrb[0].mxu0
        %v1317 = vadd.f32 0.0, %v1316
        %v1318 = vpop.f32.mrb[0].mxu0
        %1319 = vmatprep.mubr.f32.mxu0 0.0
        %1320 = vmatmul.mubr.f32.gmra.mrb[0].mxu0 %v747
        %v1321 = vpop.f32.mrb[0].mxu0
        %v1322 = vadd.f32 0.0, %v1321
        %v1323 = vpop.f32.mrb[0].mxu0
        %1324 = vdwg.mxu0
        %1325 = vmatprep.subr.mxu0 0.0
        %1326 = vmatpush1.msra.mxu0 %v630
        %1327 = vmatprep.subr.mxu0 0.0
        %1328 = vmatpush1.msra.mxu0 %v635
        %1329 = vmatprep.subr.mxu0 0.0
        %1330 = vmatpush1.msra.mxu0 0.0
        %1331 = vmatprep.subr.mxu0 0.0
        %1332 = vmatpush1.msra.mxu0 0.0
        %1333 = vmatprep.subr.mxu0 0.0
        %1334 = vmatpush1.msra.mxu0 0.0
        %1335 = vmatprep.subr.mxu0 0.0
        %1336 = vmatpush1.msra.mxu0 0.0
        %1337 = vmatprep.subr.mxu0 0.0
        %1338 = vmatpush1.msra.mxu0 0.0
        %1339 = vmatprep.subr.mxu0 0.0
        %1340 = vmatpush1.msra.mxu0 0.0
        %1341 = vmatprep.subr.mxu0 0.0
        %1342 = vmatpush1.msra.mxu0 0.0
        %1343 = vmatprep.subr.mxu0 0.0
        %1344 = vmatpush1.msra.mxu0 0.0
        %1345 = vmatprep.subr.mxu0 0.0
        %1346 = vmatpush1.msra.mxu0 0.0
        %1347 = vmatprep.subr.mxu0 0.0
        %1348 = vmatpush1.msra.mxu0 0.0
        %1349 = vmatprep.subr.mxu0 0.0
        %1350 = vmatpush1.msra.mxu0 0.0
        %1351 = vmatprep.subr.mxu0 0.0
        %1352 = vmatpush1.msra.mxu0 0.0
        %1353 = vmatprep.subr.mxu0 0.0
        %1354 = vmatpush1.msra.mxu0 0.0
        %1355 = vmatprep.subr.mxu0 0.0
        %1356 = vmatpush1.msra.mxu0 0.0
        %1357 = vmatprep.subr.mxu0 0.0
        %1358 = vmatpush1.msra.mxu0 0.0
        %1359 = vmatprep.subr.mxu0 0.0
        %1360 = vmatpush1.msra.mxu0 0.0
        %1361 = vmatprep.subr.mxu0 0.0
        %1362 = vmatpush1.msra.mxu0 0.0
        %1363 = vmatprep.subr.mxu0 0.0
        %1364 = vmatpush1.msra.mxu0 0.0
        %1365 = vmatprep.subr.mxu0 0.0
        %1366 = vmatpush1.msra.mxu0 0.0
        %1367 = vmatprep.subr.mxu0 0.0
        %1368 = vmatpush1.msra.mxu0 0.0
        %1369 = vmatprep.subr.mxu0 0.0
        %1370 = vmatpush1.msra.mxu0 0.0
        %1371 = vmatprep.subr.mxu0 0.0
        %1372 = vmatpush1.msra.mxu0 0.0
        %1373 = vmatprep.subr.mxu0 0.0
        %1374 = vmatpush1.msra.mxu0 0.0
        %1375 = vmatprep.subr.mxu0 0.0
        %1376 = vmatpush1.msra.mxu0 0.0
        %1377 = vmatprep.subr.mxu0 0.0
        %1378 = vmatpush1.msra.mxu0 0.0
        %1379 = vmatprep.subr.mxu0 0.0
        %1380 = vmatpush1.msra.mxu0 0.0
        %1381 = vmatprep.subr.mxu0 0.0
        %1382 = vmatpush1.msra.mxu0 0.0
        %1383 = vmatprep.subr.mxu0 0.0
        %1384 = vmatpush1.msra.mxu0 0.0
        %1385 = vmatprep.subr.mxu0 0.0
        %1386 = vmatpush1.msra.mxu0 0.0
        %1387 = vmatprep.subr.mxu0 0.0
        %1388 = vmatpush1.msra.mxu0 0.0
        %1389 = vmatprep.mubr.f32.mxu0 0.0
        %1390 = vmatmul.mubr.f32.gmra.mrb[0].mxu0 %v744
        %v1391 = vpop.f32.mrb[0].mxu0
        %v1392 = vadd.f32 0.0, %v1391
        %v1393 = vpop.f32.mrb[0].mxu0
        %1394 = vmatprep.mubr.f32.mxu0 0.0
        %1395 = vmatmul.mubr.f32.gmra.mrb[0].mxu0 %v747
        %v1396 = vpop.f32.mrb[0].mxu0
        %v1397 = vadd.f32 0.0, %v1396
        %v1398 = vpop.f32.mrb[0].mxu0
        %1399 = vdwg.mxu0
        %1400 = vmatprep.subr.mxu0 0.0
        %1401 = vmatpush1.msra.mxu0 %v670
        %1402 = vmatprep.subr.mxu0 0.0
        %1403 = vmatpush1.msra.mxu0 %v675
        %1404 = vmatprep.subr.mxu0 0.0
        %1405 = vmatpush1.msra.mxu0 0.0
        %1406 = vmatprep.subr.mxu0 0.0
        %1407 = vmatpush1.msra.mxu0 0.0
        %1408 = vmatprep.subr.mxu0 0.0
        %1409 = vmatpush1.msra.mxu0 0.0
        %1410 = vmatprep.subr.mxu0 0.0
        %1411 = vmatpush1.msra.mxu0 0.0
        %1412 = vmatprep.subr.mxu0 0.0
        %1413 = vmatpush1.msra.mxu0 0.0
        %1414 = vmatprep.subr.mxu0 0.0
        %1415 = vmatpush1.msra.mxu0 0.0
        %1416 = vmatprep.subr.mxu0 0.0
        %1417 = vmatpush1.msra.mxu0 0.0
        %1418 = vmatprep.subr.mxu0 0.0
        %1419 = vmatpush1.msra.mxu0 0.0
        %1420 = vmatprep.subr.mxu0 0.0
        %1421 = vmatpush1.msra.mxu0 0.0
        %1422 = vmatprep.subr.mxu0 0.0
        %1423 = vmatpush1.msra.mxu0 0.0
        %1424 = vmatprep.subr.mxu0 0.0
        %1425 = vmatpush1.msra.mxu0 0.0
        %1426 = vmatprep.subr.mxu0 0.0
        %1427 = vmatpush1.msra.mxu0 0.0
        %1428 = vmatprep.subr.mxu0 0.0
        %1429 = vmatpush1.msra.mxu0 0.0
        %1430 = vmatprep.subr.mxu0 0.0
        %1431 = vmatpush1.msra.mxu0 0.0
        %1432 = vmatprep.subr.mxu0 0.0
        %1433 = vmatpush1.msra.mxu0 0.0
        %1434 = vmatprep.subr.mxu0 0.0
        %1435 = vmatpush1.msra.mxu0 0.0
        %1436 = vmatprep.subr.mxu0 0.0
        %1437 = vmatpush1.msra.mxu0 0.0
        %1438 = vmatprep.subr.mxu0 0.0
        %1439 = vmatpush1.msra.mxu0 0.0
        %1440 = vmatprep.subr.mxu0 0.0
        %1441 = vmatpush1.msra.mxu0 0.0
        %1442 = vmatprep.subr.mxu0 0.0
        %1443 = vmatpush1.msra.mxu0 0.0
        %1444 = vmatprep.subr.mxu0 0.0
        %1445 = vmatpush1.msra.mxu0 0.0
        %1446 = vmatprep.subr.mxu0 0.0
        %1447 = vmatpush1.msra.mxu0 0.0
        %1448 = vmatprep.subr.mxu0 0.0
        %1449 = vmatpush1.msra.mxu0 0.0
        %1450 = vmatprep.subr.mxu0 0.0
        %1451 = vmatpush1.msra.mxu0 0.0
        %1452 = vmatprep.subr.mxu0 0.0
        %1453 = vmatpush1.msra.mxu0 0.0
        %1454 = vmatprep.subr.mxu0 0.0
        %1455 = vmatpush1.msra.mxu0 0.0
        %1456 = vmatprep.subr.mxu0 0.0
        %1457 = vmatpush1.msra.mxu0 0.0
        %1458 = vmatprep.subr.mxu0 0.0
        %1459 = vmatpush1.msra.mxu0 0.0
        %1460 = vmatprep.subr.mxu0 0.0
        %1461 = vmatpush1.msra.mxu0 0.0
        %1462 = vmatprep.subr.mxu0 0.0
        %1463 = vmatpush1.msra.mxu0 0.0
        %1464 = vmatprep.mubr.f32.mxu0 0.0
        %1465 = vmatmul.mubr.f32.gmra.mrb[0].mxu0 %v744
        %v1466 = vpop.f32.mrb[0].mxu0
        %v1467 = vadd.f32 0.0, %v1466
        %v1468 = vpop.f32.mrb[0].mxu0
        %1469 = vmatprep.mubr.f32.mxu0 0.0
        %1470 = vmatmul.mubr.f32.gmra.mrb[0].mxu0 %v747
        %v1471 = vpop.f32.mrb[0].mxu0
        %v1472 = vadd.f32 0.0, %v1471
        %v1473 = vpop.f32.mrb[0].mxu0
        %1474 = vdwg.mxu0
        %1475 = vmatprep.subr.mxu0 0.0
        %1476 = vmatpush1.msra.mxu0 %v710
        %1477 = vmatprep.subr.mxu0 0.0
        %1478 = vmatpush1.msra.mxu0 %v715
        %1479 = vmatprep.subr.mxu0 0.0
        %1480 = vmatpush1.msra.mxu0 0.0
        %1481 = vmatprep.subr.mxu0 0.0
        %1482 = vmatpush1.msra.mxu0 0.0
        %1483 = vmatprep.subr.mxu0 0.0
        %1484 = vmatpush1.msra.mxu0 0.0
        %1485 = vmatprep.subr.mxu0 0.0
        %1486 = vmatpush1.msra.mxu0 0.0
        %1487 = vmatprep.subr.mxu0 0.0
        %1488 = vmatpush1.msra.mxu0 0.0
        %1489 = vmatprep.subr.mxu0 0.0
        %1490 = vmatpush1.msra.mxu0 0.0
        %1491 = vmatprep.subr.mxu0 0.0
        %1492 = vmatpush1.msra.mxu0 0.0
        %1493 = vmatprep.subr.mxu0 0.0
        %1494 = vmatpush1.msra.mxu0 0.0
        %1495 = vmatprep.subr.mxu0 0.0
        %1496 = vmatpush1.msra.mxu0 0.0
        %1497 = vmatprep.subr.mxu0 0.0
        %1498 = vmatpush1.msra.mxu0 0.0
        %1499 = vmatprep.subr.mxu0 0.0
        %1500 = vmatpush1.msra.mxu0 0.0
        %1501 = vmatprep.subr.mxu0 0.0
        %1502 = vmatpush1.msra.mxu0 0.0
        %1503 = vmatprep.subr.mxu0 0.0
        %1504 = vmatpush1.msra.mxu0 0.0
        %1505 = vmatprep.subr.mxu0 0.0
        %1506 = vmatpush1.msra.mxu0 0.0
        %1507 = vmatprep.subr.mxu0 0.0
        %1508 = vmatpush1.msra.mxu0 0.0
        %1509 = vmatprep.subr.mxu0 0.0
        %1510 = vmatpush1.msra.mxu0 0.0
        %1511 = vmatprep.subr.mxu0 0.0
        %1512 = vmatpush1.msra.mxu0 0.0
        %1513 = vmatprep.subr.mxu0 0.0
        %1514 = vmatpush1.msra.mxu0 0.0
        %1515 = vmatprep.subr.mxu0 0.0
        %1516 = vmatpush1.msra.mxu0 0.0
        %1517 = vmatprep.subr.mxu0 0.0
        %1518 = vmatpush1.msra.mxu0 0.0
        %1519 = vmatprep.subr.mxu0 0.0
        %1520 = vmatpush1.msra.mxu0 0.0
        %1521 = vmatprep.subr.mxu0 0.0
        %1522 = vmatpush1.msra.mxu0 0.0
        %1523 = vmatprep.subr.mxu0 0.0
        %1524 = vmatpush1.msra.mxu0 0.0
        %1525 = vmatprep.subr.mxu0 0.0
        %1526 = vmatpush1.msra.mxu0 0.0
        %1527 = vmatprep.subr.mxu0 0.0
        %1528 = vmatpush1.msra.mxu0 0.0
        %1529 = vmatprep.subr.mxu0 0.0
        %1530 = vmatpush1.msra.mxu0 0.0
        %1531 = vmatprep.subr.mxu0 0.0
        %1532 = vmatpush1.msra.mxu0 0.0
        %1533 = vmatprep.subr.mxu0 0.0
        %1534 = vmatpush1.msra.mxu0 0.0
        %1535 = vmatprep.subr.mxu0 0.0
        %1536 = vmatpush1.msra.mxu0 0.0
        %1537 = vmatprep.subr.mxu0 0.0
        %1538 = vmatpush1.msra.mxu0 0.0
        %1539 = vmatprep.mubr.f32.mxu0 0.0
        %1540 = vmatmul.mubr.f32.gmra.mrb[0].mxu0 %v744
        %v1541 = vpop.f32.mrb[0].mxu0
        %v1542 = vadd.f32 0.0, %v1541
        %v1543 = vpop.f32.mrb[0].mxu0
        %1544 = vmatprep.mubr.f32.mxu0 0.0
        %1545 = vmatmul.mubr.f32.gmra.mrb[0].mxu0 %v747
        %v1546 = vpop.f32.mrb[0].mxu0
        %v1547 = vadd.f32 0.0, %v1546
        %v1548 = vpop.f32.mrb[0].mxu0
        %1549 = vdwg.mxu0
        %v1550 = vmul.f32 %v1242, %v1242
        %v1551 = vmul.f32 %v1247, %v1247
        %v1552 = vmul.f32 %v1317, %v1317
        %v1553 = vmul.f32 %v1322, %v1322
        %v1554 = vmul.f32 %v1242, %v1317
        %v1555 = vmul.f32 %v1247, %v1322
        %v1556 = vsub.f32 %v1392, %v1550
        %v1557 = vsub.f32 %v1397, %v1551
        %v1558 = vsub.f32 %v1467, %v1552
        %v1559 = vsub.f32 %v1472, %v1553
        %v1560 = vsub.f32 %v1542, %v1554
        %v1561 = vsub.f32 %v1547, %v1555
        %v1562 = vmul.f32 %v1554, 2.0
        %v1563 = vmul.f32 %v1555, 2.0
        %v1564 = vadd.f32 %v1562, 0.0001
        %v1565 = vadd.f32 %v1563, 0.0001
        %v1566 = vmul.f32 %v1560, 2.0
        %v1567 = vmul.f32 %v1561, 2.0
        %v1568 = vadd.f32 %v1566, 0.0009
        %v1569 = vadd.f32 %v1567, 0.0009
        %v1570 = vmul.f32 %v1564, %v1568
        %v1571 = vmul.f32 %v1565, %v1569
        %v1572 = vadd.f32 %v1550, %v1552
        %v1573 = vadd.f32 %v1551, %v1553
        %v1574 = vadd.f32 %v1572, 0.0001
        %v1575 = vadd.f32 %v1573, 0.0001
        %v1576 = vadd.f32 %v1556, %v1558
        %v1577 = vadd.f32 %v1557, %v1559
        %v1578 = vadd.f32 %v1576, 0.0009
        %v1579 = vadd.f32 %v1577, 0.0009
        %v1580 = vmul.f32 %v1574, %v1578
        %v1581 = vmul.f32 %v1575, %v1579
        %v1582 = vrcp.pop %v1580
        %v1583 = vrcp.pop %v1581
        %v1584 = vmul.f32 %v1580, %v1582
        %v1585 = vmul.f32 %v1581, %v1583
        %v1586 = vsub.f32 2.0, %v1584
        %v1587 = vsub.f32 2.0, %v1585
        %v1588 = vmul.f32 %v1582, %v1586
        %v1589 = vmul.f32 %v1583, %v1587
        %v1590 = vmul.f32 %v1570, %v1588
        %v1591 = vmul.f32 %v1571, %v1589
        %v1592 = vsel %vm740, %v1590, 0.0
        %v1593 = vsel %vm740, %v1591, 0.0
        %v1594 = vadd.f32 %v1592, %v1593
        %v1595 = vrot.slane %v1594, 4
        %v1596 = vadd.f32 %v1594, %v1595
        %v1597 = vrot.slane %v1596, 2
        %v1598 = vadd.f32 %v1596, %v1597
        %v1599 = vrot.slane %v1598, 1
        %v1600 = vadd.f32 %v1598, %v1599
        %1601 = vmatprep.subr.mxu0 0.0
        %1602 = vmatpush1.msra.mxu0 %v560
        %1603 = vmatprep.subr.mxu0 0.0
        %1604 = vmatpush1.msra.mxu0 %v565
        %1605 = vmatprep.subr.mxu0 0.0
        %1606 = vmatpush1.msra.mxu0 0.0
        %1607 = vmatprep.subr.mxu0 0.0
        %1608 = vmatpush1.msra.mxu0 0.0
        %1609 = vmatprep.subr.mxu0 0.0
        %1610 = vmatpush1.msra.mxu0 0.0
        %1611 = vmatprep.subr.mxu0 0.0
        %1612 = vmatpush1.msra.mxu0 0.0
        %1613 = vmatprep.subr.mxu0 0.0
        %1614 = vmatpush1.msra.mxu0 0.0
        %1615 = vmatprep.subr.mxu0 0.0
        %1616 = vmatpush1.msra.mxu0 0.0
        %1617 = vmatprep.subr.mxu0 0.0
        %1618 = vmatpush1.msra.mxu0 0.0
        %1619 = vmatprep.subr.mxu0 0.0
        %1620 = vmatpush1.msra.mxu0 0.0
        %1621 = vmatprep.subr.mxu0 0.0
        %1622 = vmatpush1.msra.mxu0 0.0
        %1623 = vmatprep.subr.mxu0 0.0
        %1624 = vmatpush1.msra.mxu0 0.0
        %1625 = vmatprep.subr.mxu0 0.0
        %1626 = vmatpush1.msra.mxu0 0.0
        %1627 = vmatprep.subr.mxu0 0.0
        %1628 = vmatpush1.msra.mxu0 0.0
        %1629 = vmatprep.subr.mxu0 0.0
        %1630 = vmatpush1.msra.mxu0 0.0
        %1631 = vmatprep.subr.mxu0 0.0
        %1632 = vmatpush1.msra.mxu0 0.0
        %1633 = vmatprep.subr.mxu0 0.0
        %1634 = vmatpush1.msra.mxu0 0.0
        %1635 = vmatprep.subr.mxu0 0.0
        %1636 = vmatpush1.msra.mxu0 0.0
        %1637 = vmatprep.subr.mxu0 0.0
        %1638 = vmatpush1.msra.mxu0 0.0
        %1639 = vmatprep.subr.mxu0 0.0
        %1640 = vmatpush1.msra.mxu0 0.0
        %1641 = vmatprep.subr.mxu0 0.0
        %1642 = vmatpush1.msra.mxu0 0.0
        %1643 = vmatprep.subr.mxu0 0.0
        %1644 = vmatpush1.msra.mxu0 0.0
        %1645 = vmatprep.subr.mxu0 0.0
        %1646 = vmatpush1.msra.mxu0 0.0
        %1647 = vmatprep.subr.mxu0 0.0
        %1648 = vmatpush1.msra.mxu0 0.0
        %1649 = vmatprep.subr.mxu0 0.0
        %1650 = vmatpush1.msra.mxu0 0.0
        %1651 = vmatprep.subr.mxu0 0.0
        %1652 = vmatpush1.msra.mxu0 0.0
        %1653 = vmatprep.subr.mxu0 0.0
        %1654 = vmatpush1.msra.mxu0 0.0
        %1655 = vmatprep.subr.mxu0 0.0
        %1656 = vmatpush1.msra.mxu0 0.0
        %1657 = vmatprep.subr.mxu0 0.0
        %1658 = vmatpush1.msra.mxu0 0.0
        %1659 = vmatprep.subr.mxu0 0.0
        %1660 = vmatpush1.msra.mxu0 0.0
        %1661 = vmatprep.subr.mxu0 0.0
        %1662 = vmatpush1.msra.mxu0 0.0
        %1663 = vmatprep.subr.mxu0 0.0
        %1664 = vmatpush1.msra.mxu0 0.0
        %1665 = vmatprep.mubr.f32.mxu0 0.0
        %1666 = vmatmul.mubr.f32.gmra.mrb[0].mxu0 %v744
        %v1667 = vpop.f32.mrb[0].mxu0
        %v1668 = vadd.f32 0.0, %v1667
        %v1669 = vpop.f32.mrb[0].mxu0
        %1670 = vmatprep.mubr.f32.mxu0 0.0
        %1671 = vmatmul.mubr.f32.gmra.mrb[0].mxu0 %v747
        %v1672 = vpop.f32.mrb[0].mxu0
        %v1673 = vadd.f32 0.0, %v1672
        %v1674 = vpop.f32.mrb[0].mxu0
        %1675 = vdwg.mxu0
        %1676 = vmatprep.subr.mxu0 0.0
        %1677 = vmatpush1.msra.mxu0 %v600
        %1678 = vmatprep.subr.mxu0 0.0
        %1679 = vmatpush1.msra.mxu0 %v605
        %1680 = vmatprep.subr.mxu0 0.0
        %1681 = vmatpush1.msra.mxu0 0.0
        %1682 = vmatprep.subr.mxu0 0.0
        %1683 = vmatpush1.msra.mxu0 0.0
        %1684 = vmatprep.subr.mxu0 0.0
        %1685 = vmatpush1.msra.mxu0 0.0
        %1686 = vmatprep.subr.mxu0 0.0
        %1687 = vmatpush1.msra.mxu0 0.0
        %1688 = vmatprep.subr.mxu0 0.0
        %1689 = vmatpush1.msra.mxu0 0.0
        %1690 = vmatprep.subr.mxu0 0.0
        %1691 = vmatpush1.msra.mxu0 0.0
        %1692 = vmatprep.subr.mxu0 0.0
        %1693 = vmatpush1.msra.mxu0 0.0
        %1694 = vmatprep.subr.mxu0 0.0
        %1695 = vmatpush1.msra.mxu0 0.0
        %1696 = vmatprep.subr.mxu0 0.0
        %1697 = vmatpush1.msra.mxu0 0.0
        %1698 = vmatprep.subr.mxu0 0.0
        %1699 = vmatpush1.msra.mxu0 0.0
        %1700 = vmatprep.subr.mxu0 0.0
        %1701 = vmatpush1.msra.mxu0 0.0
        %1702 = vmatprep.subr.mxu0 0.0
        %1703 = vmatpush1.msra.mxu0 0.0
        %1704 = vmatprep.subr.mxu0 0.0
        %1705 = vmatpush1.msra.mxu0 0.0
        %1706 = vmatprep.subr.mxu0 0.0
        %1707 = vmatpush1.msra.mxu0 0.0
        %1708 = vmatprep.subr.mxu0 0.0
        %1709 = vmatpush1.msra.mxu0 0.0
        %1710 = vmatprep.subr.mxu0 0.0
        %1711 = vmatpush1.msra.mxu0 0.0
        %1712 = vmatprep.subr.mxu0 0.0
        %1713 = vmatpush1.msra.mxu0 0.0
        %1714 = vmatprep.subr.mxu0 0.0
        %1715 = vmatpush1.msra.mxu0 0.0
        %1716 = vmatprep.subr.mxu0 0.0
        %1717 = vmatpush1.msra.mxu0 0.0
        %1718 = vmatprep.subr.mxu0 0.0
        %1719 = vmatpush1.msra.mxu0 0.0
        %1720 = vmatprep.subr.mxu0 0.0
        %1721 = vmatpush1.msra.mxu0 0.0
        %1722 = vmatprep.subr.mxu0 0.0
        %1723 = vmatpush1.msra.mxu0 0.0
        %1724 = vmatprep.subr.mxu0 0.0
        %1725 = vmatpush1.msra.mxu0 0.0
        %1726 = vmatprep.subr.mxu0 0.0
        %1727 = vmatpush1.msra.mxu0 0.0
        %1728 = vmatprep.subr.mxu0 0.0
        %1729 = vmatpush1.msra.mxu0 0.0
        %1730 = vmatprep.subr.mxu0 0.0
        %1731 = vmatpush1.msra.mxu0 0.0
        %1732 = vmatprep.subr.mxu0 0.0
        %1733 = vmatpush1.msra.mxu0 0.0
        %1734 = vmatprep.subr.mxu0 0.0
        %1735 = vmatpush1.msra.mxu0 0.0
        %1736 = vmatprep.subr.mxu0 0.0
        %1737 = vmatpush1.msra.mxu0 0.0
        %1738 = vmatprep.subr.mxu0 0.0
        %1739 = vmatpush1.msra.mxu0 0.0
        %1740 = vmatprep.mubr.f32.mxu0 0.0
        %1741 = vmatmul.mubr.f32.gmra.mrb[0].mxu0 %v744
        %v1742 = vpop.f32.mrb[0].mxu0
        %v1743 = vadd.f32 0.0, %v1742
        %v1744 = vpop.f32.mrb[0].mxu0
        %1745 = vmatprep.mubr.f32.mxu0 0.0
        %1746 = vmatmul.mubr.f32.gmra.mrb[0].mxu0 %v747
        %v1747 = vpop.f32.mrb[0].mxu0
        %v1748 = vadd.f32 0.0, %v1747
        %v1749 = vpop.f32.mrb[0].mxu0
        %1750 = vdwg.mxu0
        %1751 = vmatprep.subr.mxu0 0.0
        %1752 = vmatpush1.msra.mxu0 %v640
        %1753 = vmatprep.subr.mxu0 0.0
        %1754 = vmatpush1.msra.mxu0 %v645
        %1755 = vmatprep.subr.mxu0 0.0
        %1756 = vmatpush1.msra.mxu0 0.0
        %1757 = vmatprep.subr.mxu0 0.0
        %1758 = vmatpush1.msra.mxu0 0.0
        %1759 = vmatprep.subr.mxu0 0.0
        %1760 = vmatpush1.msra.mxu0 0.0
        %1761 = vmatprep.subr.mxu0 0.0
        %1762 = vmatpush1.msra.mxu0 0.0
        %1763 = vmatprep.subr.mxu0 0.0
        %1764 = vmatpush1.msra.mxu0 0.0
        %1765 = vmatprep.subr.mxu0 0.0
        %1766 = vmatpush1.msra.mxu0 0.0
        %1767 = vmatprep.subr.mxu0 0.0
        %1768 = vmatpush1.msra.mxu0 0.0
        %1769 = vmatprep.subr.mxu0 0.0
        %1770 = vmatpush1.msra.mxu0 0.0
        %1771 = vmatprep.subr.mxu0 0.0
        %1772 = vmatpush1.msra.mxu0 0.0
        %1773 = vmatprep.subr.mxu0 0.0
        %1774 = vmatpush1.msra.mxu0 0.0
        %1775 = vmatprep.subr.mxu0 0.0
        %1776 = vmatpush1.msra.mxu0 0.0
        %1777 = vmatprep.subr.mxu0 0.0
        %1778 = vmatpush1.msra.mxu0 0.0
        %1779 = vmatprep.subr.mxu0 0.0
        %1780 = vmatpush1.msra.mxu0 0.0
        %1781 = vmatprep.subr.mxu0 0.0
        %1782 = vmatpush1.msra.mxu0 0.0
        %1783 = vmatprep.subr.mxu0 0.0
        %1784 = vmatpush1.msra.mxu0 0.0
        %1785 = vmatprep.subr.mxu0 0.0
        %1786 = vmatpush1.msra.mxu0 0.0
        %1787 = vmatprep.subr.mxu0 0.0
        %1788 = vmatpush1.msra.mxu0 0.0
        %1789 = vmatprep.subr.mxu0 0.0
        %1790 = vmatpush1.msra.mxu0 0.0
        %1791 = vmatprep.subr.mxu0 0.0
        %1792 = vmatpush1.msra.mxu0 0.0
        %1793 = vmatprep.subr.mxu0 0.0
        %1794 = vmatpush1.msra.mxu0 0.0
        %1795 = vmatprep.subr.mxu0 0.0
        %1796 = vmatpush1.msra.mxu0 0.0
        %1797 = vmatprep.subr.mxu0 0.0
        %1798 = vmatpush1.msra.mxu0 0.0
        %1799 = vmatprep.subr.mxu0 0.0
        %1800 = vmatpush1.msra.mxu0 0.0
        %1801 = vmatprep.subr.mxu0 0.0
        %1802 = vmatpush1.msra.mxu0 0.0
        %1803 = vmatprep.subr.mxu0 0.0
        %1804 = vmatpush1.msra.mxu0 0.0
        %1805 = vmatprep.subr.mxu0 0.0
        %1806 = vmatpush1.msra.mxu0 0.0
        %1807 = vmatprep.subr.mxu0 0.0
        %1808 = vmatpush1.msra.mxu0 0.0
        %1809 = vmatprep.subr.mxu0 0.0
        %1810 = vmatpush1.msra.mxu0 0.0
        %1811 = vmatprep.subr.mxu0 0.0
        %1812 = vmatpush1.msra.mxu0 0.0
        %1813 = vmatprep.subr.mxu0 0.0
        %1814 = vmatpush1.msra.mxu0 0.0
        %1815 = vmatprep.mubr.f32.mxu0 0.0
        %1816 = vmatmul.mubr.f32.gmra.mrb[0].mxu0 %v744
        %v1817 = vpop.f32.mrb[0].mxu0
        %v1818 = vadd.f32 0.0, %v1817
        %v1819 = vpop.f32.mrb[0].mxu0
        %1820 = vmatprep.mubr.f32.mxu0 0.0
        %1821 = vmatmul.mubr.f32.gmra.mrb[0].mxu0 %v747
        %v1822 = vpop.f32.mrb[0].mxu0
        %v1823 = vadd.f32 0.0, %v1822
        %v1824 = vpop.f32.mrb[0].mxu0
        %1825 = vdwg.mxu0
        %1826 = vmatprep.subr.mxu0 0.0
        %1827 = vmatpush1.msra.mxu0 %v680
        %1828 = vmatprep.subr.mxu0 0.0
        %1829 = vmatpush1.msra.mxu0 %v685
        %1830 = vmatprep.subr.mxu0 0.0
        %1831 = vmatpush1.msra.mxu0 0.0
        %1832 = vmatprep.subr.mxu0 0.0
        %1833 = vmatpush1.msra.mxu0 0.0
        %1834 = vmatprep.subr.mxu0 0.0
        %1835 = vmatpush1.msra.mxu0 0.0
        %1836 = vmatprep.subr.mxu0 0.0
        %1837 = vmatpush1.msra.mxu0 0.0
        %1838 = vmatprep.subr.mxu0 0.0
        %1839 = vmatpush1.msra.mxu0 0.0
        %1840 = vmatprep.subr.mxu0 0.0
        %1841 = vmatpush1.msra.mxu0 0.0
        %1842 = vmatprep.subr.mxu0 0.0
        %1843 = vmatpush1.msra.mxu0 0.0
        %1844 = vmatprep.subr.mxu0 0.0
        %1845 = vmatpush1.msra.mxu0 0.0
        %1846 = vmatprep.subr.mxu0 0.0
        %1847 = vmatpush1.msra.mxu0 0.0
        %1848 = vmatprep.subr.mxu0 0.0
        %1849 = vmatpush1.msra.mxu0 0.0
        %1850 = vmatprep.subr.mxu0 0.0
        %1851 = vmatpush1.msra.mxu0 0.0
        %1852 = vmatprep.subr.mxu0 0.0
        %1853 = vmatpush1.msra.mxu0 0.0
        %1854 = vmatprep.subr.mxu0 0.0
        %1855 = vmatpush1.msra.mxu0 0.0
        %1856 = vmatprep.subr.mxu0 0.0
        %1857 = vmatpush1.msra.mxu0 0.0
        %1858 = vmatprep.subr.mxu0 0.0
        %1859 = vmatpush1.msra.mxu0 0.0
        %1860 = vmatprep.subr.mxu0 0.0
        %1861 = vmatpush1.msra.mxu0 0.0
        %1862 = vmatprep.subr.mxu0 0.0
        %1863 = vmatpush1.msra.mxu0 0.0
        %1864 = vmatprep.subr.mxu0 0.0
        %1865 = vmatpush1.msra.mxu0 0.0
        %1866 = vmatprep.subr.mxu0 0.0
        %1867 = vmatpush1.msra.mxu0 0.0
        %1868 = vmatprep.subr.mxu0 0.0
        %1869 = vmatpush1.msra.mxu0 0.0
        %1870 = vmatprep.subr.mxu0 0.0
        %1871 = vmatpush1.msra.mxu0 0.0
        %1872 = vmatprep.subr.mxu0 0.0
        %1873 = vmatpush1.msra.mxu0 0.0
        %1874 = vmatprep.subr.mxu0 0.0
        %1875 = vmatpush1.msra.mxu0 0.0
        %1876 = vmatprep.subr.mxu0 0.0
        %1877 = vmatpush1.msra.mxu0 0.0
        %1878 = vmatprep.subr.mxu0 0.0
        %1879 = vmatpush1.msra.mxu0 0.0
        %1880 = vmatprep.subr.mxu0 0.0
        %1881 = vmatpush1.msra.mxu0 0.0
        %1882 = vmatprep.subr.mxu0 0.0
        %1883 = vmatpush1.msra.mxu0 0.0
        %1884 = vmatprep.subr.mxu0 0.0
        %1885 = vmatpush1.msra.mxu0 0.0
        %1886 = vmatprep.subr.mxu0 0.0
        %1887 = vmatpush1.msra.mxu0 0.0
        %1888 = vmatprep.subr.mxu0 0.0
        %1889 = vmatpush1.msra.mxu0 0.0
        %1890 = vmatprep.mubr.f32.mxu0 0.0
        %1891 = vmatmul.mubr.f32.gmra.mrb[0].mxu0 %v744
        %v1892 = vpop.f32.mrb[0].mxu0
        %v1893 = vadd.f32 0.0, %v1892
        %v1894 = vpop.f32.mrb[0].mxu0
        %1895 = vmatprep.mubr.f32.mxu0 0.0
        %1896 = vmatmul.mubr.f32.gmra.mrb[0].mxu0 %v747
        %v1897 = vpop.f32.mrb[0].mxu0
        %v1898 = vadd.f32 0.0, %v1897
        %v1899 = vpop.f32.mrb[0].mxu0
        %1900 = vdwg.mxu0
        %1901 = vmatprep.subr.mxu0 0.0
        %1902 = vmatpush1.msra.mxu0 %v720
        %1903 = vmatprep.subr.mxu0 0.0
        %1904 = vmatpush1.msra.mxu0 %v725
        %1905 = vmatprep.subr.mxu0 0.0
        %1906 = vmatpush1.msra.mxu0 0.0
        %1907 = vmatprep.subr.mxu0 0.0
        %1908 = vmatpush1.msra.mxu0 0.0
        %1909 = vmatprep.subr.mxu0 0.0
        %1910 = vmatpush1.msra.mxu0 0.0
        %1911 = vmatprep.subr.mxu0 0.0
        %1912 = vmatpush1.msra.mxu0 0.0
        %1913 = vmatprep.subr.mxu0 0.0
        %1914 = vmatpush1.msra.mxu0 0.0
        %1915 = vmatprep.subr.mxu0 0.0
        %1916 = vmatpush1.msra.mxu0 0.0
        %1917 = vmatprep.subr.mxu0 0.0
        %1918 = vmatpush1.msra.mxu0 0.0
        %1919 = vmatprep.subr.mxu0 0.0
        %1920 = vmatpush1.msra.mxu0 0.0
        %1921 = vmatprep.subr.mxu0 0.0
        %1922 = vmatpush1.msra.mxu0 0.0
        %1923 = vmatprep.subr.mxu0 0.0
        %1924 = vmatpush1.msra.mxu0 0.0
        %1925 = vmatprep.subr.mxu0 0.0
        %1926 = vmatpush1.msra.mxu0 0.0
        %1927 = vmatprep.subr.mxu0 0.0
        %1928 = vmatpush1.msra.mxu0 0.0
        %1929 = vmatprep.subr.mxu0 0.0
        %1930 = vmatpush1.msra.mxu0 0.0
        %1931 = vmatprep.subr.mxu0 0.0
        %1932 = vmatpush1.msra.mxu0 0.0
        %1933 = vmatprep.subr.mxu0 0.0
        %1934 = vmatpush1.msra.mxu0 0.0
        %1935 = vmatprep.subr.mxu0 0.0
        %1936 = vmatpush1.msra.mxu0 0.0
        %1937 = vmatprep.subr.mxu0 0.0
        %1938 = vmatpush1.msra.mxu0 0.0
        %1939 = vmatprep.subr.mxu0 0.0
        %1940 = vmatpush1.msra.mxu0 0.0
        %1941 = vmatprep.subr.mxu0 0.0
        %1942 = vmatpush1.msra.mxu0 0.0
        %1943 = vmatprep.subr.mxu0 0.0
        %1944 = vmatpush1.msra.mxu0 0.0
        %1945 = vmatprep.subr.mxu0 0.0
        %1946 = vmatpush1.msra.mxu0 0.0
        %1947 = vmatprep.subr.mxu0 0.0
        %1948 = vmatpush1.msra.mxu0 0.0
        %1949 = vmatprep.subr.mxu0 0.0
        %1950 = vmatpush1.msra.mxu0 0.0
        %1951 = vmatprep.subr.mxu0 0.0
        %1952 = vmatpush1.msra.mxu0 0.0
        %1953 = vmatprep.subr.mxu0 0.0
        %1954 = vmatpush1.msra.mxu0 0.0
        %1955 = vmatprep.subr.mxu0 0.0
        %1956 = vmatpush1.msra.mxu0 0.0
        %1957 = vmatprep.subr.mxu0 0.0
        %1958 = vmatpush1.msra.mxu0 0.0
        %1959 = vmatprep.subr.mxu0 0.0
        %1960 = vmatpush1.msra.mxu0 0.0
        %1961 = vmatprep.subr.mxu0 0.0
        %1962 = vmatpush1.msra.mxu0 0.0
        %1963 = vmatprep.subr.mxu0 0.0
        %1964 = vmatpush1.msra.mxu0 0.0
        %1965 = vmatprep.mubr.f32.mxu0 0.0
        %1966 = vmatmul.mubr.f32.gmra.mrb[0].mxu0 %v744
        %v1967 = vpop.f32.mrb[0].mxu0
        %v1968 = vadd.f32 0.0, %v1967
        %v1969 = vpop.f32.mrb[0].mxu0
        %1970 = vmatprep.mubr.f32.mxu0 0.0
        %1971 = vmatmul.mubr.f32.gmra.mrb[0].mxu0 %v747
        %v1972 = vpop.f32.mrb[0].mxu0
        %v1973 = vadd.f32 0.0, %v1972
        %v1974 = vpop.f32.mrb[0].mxu0
        %1975 = vdwg.mxu0
        %v1976 = vmul.f32 %v1668, %v1668
        %v1977 = vmul.f32 %v1673, %v1673
        %v1978 = vmul.f32 %v1743, %v1743
        %v1979 = vmul.f32 %v1748, %v1748
        %v1980 = vmul.f32 %v1668, %v1743
        %v1981 = vmul.f32 %v1673, %v1748
        %v1982 = vsub.f32 %v1818, %v1976
        %v1983 = vsub.f32 %v1823, %v1977
        %v1984 = vsub.f32 %v1893, %v1978
        %v1985 = vsub.f32 %v1898, %v1979
        %v1986 = vsub.f32 %v1968, %v1980
        %v1987 = vsub.f32 %v1973, %v1981
        %v1988 = vmul.f32 %v1980, 2.0
        %v1989 = vmul.f32 %v1981, 2.0
        %v1990 = vadd.f32 %v1988, 0.0001
        %v1991 = vadd.f32 %v1989, 0.0001
        %v1992 = vmul.f32 %v1986, 2.0
        %v1993 = vmul.f32 %v1987, 2.0
        %v1994 = vadd.f32 %v1992, 0.0009
        %v1995 = vadd.f32 %v1993, 0.0009
        %v1996 = vmul.f32 %v1990, %v1994
        %v1997 = vmul.f32 %v1991, %v1995
        %v1998 = vadd.f32 %v1976, %v1978
        %v1999 = vadd.f32 %v1977, %v1979
        %v2000 = vadd.f32 %v1998, 0.0001
        %v2001 = vadd.f32 %v1999, 0.0001
        %v2002 = vadd.f32 %v1982, %v1984
        %v2003 = vadd.f32 %v1983, %v1985
        %v2004 = vadd.f32 %v2002, 0.0009
        %v2005 = vadd.f32 %v2003, 0.0009
        %v2006 = vmul.f32 %v2000, %v2004
        %v2007 = vmul.f32 %v2001, %v2005
        %v2008 = vrcp.pop %v2006
        %v2009 = vrcp.pop %v2007
        %v2010 = vmul.f32 %v2006, %v2008
        %v2011 = vmul.f32 %v2007, %v2009
        %v2012 = vsub.f32 2.0, %v2010
        %v2013 = vsub.f32 2.0, %v2011
        %v2014 = vmul.f32 %v2008, %v2012
        %v2015 = vmul.f32 %v2009, %v2013
        %v2016 = vmul.f32 %v1996, %v2014
        %v2017 = vmul.f32 %v1997, %v2015
        %v2018 = vsel %vm740, %v2016, 0.0
        %v2019 = vsel %vm740, %v2017, 0.0
        %v2020 = vadd.f32 %v2018, %v2019
        %v2021 = vrot.slane %v2020, 4
        %v2022 = vadd.f32 %v2020, %v2021
        %v2023 = vrot.slane %v2022, 2
        %v2024 = vadd.f32 %v2022, %v2023
        %v2025 = vrot.slane %v2024, 1
        %v2026 = vadd.f32 %v2024, %v2025
        %2027 = vmatprep.subr.mxu0 0.0
        %2028 = vmatpush1.msra.mxu0 %v570
        %2029 = vmatprep.subr.mxu0 0.0
        %2030 = vmatpush1.msra.mxu0 %v575
        %2031 = vmatprep.subr.mxu0 0.0
        %2032 = vmatpush1.msra.mxu0 0.0
        %2033 = vmatprep.subr.mxu0 0.0
        %2034 = vmatpush1.msra.mxu0 0.0
        %2035 = vmatprep.subr.mxu0 0.0
        %2036 = vmatpush1.msra.mxu0 0.0
        %2037 = vmatprep.subr.mxu0 0.0
        %2038 = vmatpush1.msra.mxu0 0.0
        %2039 = vmatprep.subr.mxu0 0.0
        %2040 = vmatpush1.msra.mxu0 0.0
        %2041 = vmatprep.subr.mxu0 0.0
        %2042 = vmatpush1.msra.mxu0 0.0
        %2043 = vmatprep.subr.mxu0 0.0
        %2044 = vmatpush1.msra.mxu0 0.0
        %2045 = vmatprep.subr.mxu0 0.0
        %2046 = vmatpush1.msra.mxu0 0.0
        %2047 = vmatprep.subr.mxu0 0.0
        %2048 = vmatpush1.msra.mxu0 0.0
        %2049 = vmatprep.subr.mxu0 0.0
        %2050 = vmatpush1.msra.mxu0 0.0
        %2051 = vmatprep.subr.mxu0 0.0
        %2052 = vmatpush1.msra.mxu0 0.0
        %2053 = vmatprep.subr.mxu0 0.0
        %2054 = vmatpush1.msra.mxu0 0.0
        %2055 = vmatprep.subr.mxu0 0.0
        %2056 = vmatpush1.msra.mxu0 0.0
        %2057 = vmatprep.subr.mxu0 0.0
        %2058 = vmatpush1.msra.mxu0 0.0
        %2059 = vmatprep.subr.mxu0 0.0
        %2060 = vmatpush1.msra.mxu0 0.0
        %2061 = vmatprep.subr.mxu0 0.0
        %2062 = vmatpush1.msra.mxu0 0.0
        %2063 = vmatprep.subr.mxu0 0.0
        %2064 = vmatpush1.msra.mxu0 0.0
        %2065 = vmatprep.subr.mxu0 0.0
        %2066 = vmatpush1.msra.mxu0 0.0
        %2067 = vmatprep.subr.mxu0 0.0
        %2068 = vmatpush1.msra.mxu0 0.0
        %2069 = vmatprep.subr.mxu0 0.0
        %2070 = vmatpush1.msra.mxu0 0.0
        %2071 = vmatprep.subr.mxu0 0.0
        %2072 = vmatpush1.msra.mxu0 0.0
        %2073 = vmatprep.subr.mxu0 0.0
        %2074 = vmatpush1.msra.mxu0 0.0
        %2075 = vmatprep.subr.mxu0 0.0
        %2076 = vmatpush1.msra.mxu0 0.0
        %2077 = vmatprep.subr.mxu0 0.0
        %2078 = vmatpush1.msra.mxu0 0.0
        %2079 = vmatprep.subr.mxu0 0.0
        %2080 = vmatpush1.msra.mxu0 0.0
        %2081 = vmatprep.subr.mxu0 0.0
        %2082 = vmatpush1.msra.mxu0 0.0
        %2083 = vmatprep.subr.mxu0 0.0
        %2084 = vmatpush1.msra.mxu0 0.0
        %2085 = vmatprep.subr.mxu0 0.0
        %2086 = vmatpush1.msra.mxu0 0.0
        %2087 = vmatprep.subr.mxu0 0.0
        %2088 = vmatpush1.msra.mxu0 0.0
        %2089 = vmatprep.subr.mxu0 0.0
        %2090 = vmatpush1.msra.mxu0 0.0
        %2091 = vmatprep.mubr.f32.mxu0 0.0
        %2092 = vmatmul.mubr.f32.gmra.mrb[0].mxu0 %v744
        %v2093 = vpop.f32.mrb[0].mxu0
        %v2094 = vadd.f32 0.0, %v2093
        %v2095 = vpop.f32.mrb[0].mxu0
        %2096 = vmatprep.mubr.f32.mxu0 0.0
        %2097 = vmatmul.mubr.f32.gmra.mrb[0].mxu0 %v747
        %v2098 = vpop.f32.mrb[0].mxu0
        %v2099 = vadd.f32 0.0, %v2098
        %v2100 = vpop.f32.mrb[0].mxu0
        %2101 = vdwg.mxu0
        %2102 = vmatprep.subr.mxu0 0.0
        %2103 = vmatpush1.msra.mxu0 %v610
        %2104 = vmatprep.subr.mxu0 0.0
        %2105 = vmatpush1.msra.mxu0 %v615
        %2106 = vmatprep.subr.mxu0 0.0
        %2107 = vmatpush1.msra.mxu0 0.0
        %2108 = vmatprep.subr.mxu0 0.0
        %2109 = vmatpush1.msra.mxu0 0.0
        %2110 = vmatprep.subr.mxu0 0.0
        %2111 = vmatpush1.msra.mxu0 0.0
        %2112 = vmatprep.subr.mxu0 0.0
        %2113 = vmatpush1.msra.mxu0 0.0
        %2114 = vmatprep.subr.mxu0 0.0
        %2115 = vmatpush1.msra.mxu0 0.0
        %2116 = vmatprep.subr.mxu0 0.0
        %2117 = vmatpush1.msra.mxu0 0.0
        %2118 = vmatprep.subr.mxu0 0.0
        %2119 = vmatpush1.msra.mxu0 0.0
        %2120 = vmatprep.subr.mxu0 0.0
        %2121 = vmatpush1.msra.mxu0 0.0
        %2122 = vmatprep.subr.mxu0 0.0
        %2123 = vmatpush1.msra.mxu0 0.0
        %2124 = vmatprep.subr.mxu0 0.0
        %2125 = vmatpush1.msra.mxu0 0.0
        %2126 = vmatprep.subr.mxu0 0.0
        %2127 = vmatpush1.msra.mxu0 0.0
        %2128 = vmatprep.subr.mxu0 0.0
        %2129 = vmatpush1.msra.mxu0 0.0
        %2130 = vmatprep.subr.mxu0 0.0
        %2131 = vmatpush1.msra.mxu0 0.0
        %2132 = vmatprep.subr.mxu0 0.0
        %2133 = vmatpush1.msra.mxu0 0.0
        %2134 = vmatprep.subr.mxu0 0.0
        %2135 = vmatpush1.msra.mxu0 0.0
        %2136 = vmatprep.subr.mxu0 0.0
        %2137 = vmatpush1.msra.mxu0 0.0
        %2138 = vmatprep.subr.mxu0 0.0
        %2139 = vmatpush1.msra.mxu0 0.0
        %2140 = vmatprep.subr.mxu0 0.0
        %2141 = vmatpush1.msra.mxu0 0.0
        %2142 = vmatprep.subr.mxu0 0.0
        %2143 = vmatpush1.msra.mxu0 0.0
        %2144 = vmatprep.subr.mxu0 0.0
        %2145 = vmatpush1.msra.mxu0 0.0
        %2146 = vmatprep.subr.mxu0 0.0
        %2147 = vmatpush1.msra.mxu0 0.0
        %2148 = vmatprep.subr.mxu0 0.0
        %2149 = vmatpush1.msra.mxu0 0.0
        %2150 = vmatprep.subr.mxu0 0.0
        %2151 = vmatpush1.msra.mxu0 0.0
        %2152 = vmatprep.subr.mxu0 0.0
        %2153 = vmatpush1.msra.mxu0 0.0
        %2154 = vmatprep.subr.mxu0 0.0
        %2155 = vmatpush1.msra.mxu0 0.0
        %2156 = vmatprep.subr.mxu0 0.0
        %2157 = vmatpush1.msra.mxu0 0.0
        %2158 = vmatprep.subr.mxu0 0.0
        %2159 = vmatpush1.msra.mxu0 0.0
        %2160 = vmatprep.subr.mxu0 0.0
        %2161 = vmatpush1.msra.mxu0 0.0
        %2162 = vmatprep.subr.mxu0 0.0
        %2163 = vmatpush1.msra.mxu0 0.0
        %2164 = vmatprep.subr.mxu0 0.0
        %2165 = vmatpush1.msra.mxu0 0.0
        %2166 = vmatprep.mubr.f32.mxu0 0.0
        %2167 = vmatmul.mubr.f32.gmra.mrb[0].mxu0 %v744
        %v2168 = vpop.f32.mrb[0].mxu0
        %v2169 = vadd.f32 0.0, %v2168
        %v2170 = vpop.f32.mrb[0].mxu0
        %2171 = vmatprep.mubr.f32.mxu0 0.0
        %2172 = vmatmul.mubr.f32.gmra.mrb[0].mxu0 %v747
        %v2173 = vpop.f32.mrb[0].mxu0
        %v2174 = vadd.f32 0.0, %v2173
        %v2175 = vpop.f32.mrb[0].mxu0
        %2176 = vdwg.mxu0
        %2177 = vmatprep.subr.mxu0 0.0
        %2178 = vmatpush1.msra.mxu0 %v650
        %2179 = vmatprep.subr.mxu0 0.0
        %2180 = vmatpush1.msra.mxu0 %v655
        %2181 = vmatprep.subr.mxu0 0.0
        %2182 = vmatpush1.msra.mxu0 0.0
        %2183 = vmatprep.subr.mxu0 0.0
        %2184 = vmatpush1.msra.mxu0 0.0
        %2185 = vmatprep.subr.mxu0 0.0
        %2186 = vmatpush1.msra.mxu0 0.0
        %2187 = vmatprep.subr.mxu0 0.0
        %2188 = vmatpush1.msra.mxu0 0.0
        %2189 = vmatprep.subr.mxu0 0.0
        %2190 = vmatpush1.msra.mxu0 0.0
        %2191 = vmatprep.subr.mxu0 0.0
        %2192 = vmatpush1.msra.mxu0 0.0
        %2193 = vmatprep.subr.mxu0 0.0
        %2194 = vmatpush1.msra.mxu0 0.0
        %2195 = vmatprep.subr.mxu0 0.0
        %2196 = vmatpush1.msra.mxu0 0.0
        %2197 = vmatprep.subr.mxu0 0.0
        %2198 = vmatpush1.msra.mxu0 0.0
        %2199 = vmatprep.subr.mxu0 0.0
        %2200 = vmatpush1.msra.mxu0 0.0
        %2201 = vmatprep.subr.mxu0 0.0
        %2202 = vmatpush1.msra.mxu0 0.0
        %2203 = vmatprep.subr.mxu0 0.0
        %2204 = vmatpush1.msra.mxu0 0.0
        %2205 = vmatprep.subr.mxu0 0.0
        %2206 = vmatpush1.msra.mxu0 0.0
        %2207 = vmatprep.subr.mxu0 0.0
        %2208 = vmatpush1.msra.mxu0 0.0
        %2209 = vmatprep.subr.mxu0 0.0
        %2210 = vmatpush1.msra.mxu0 0.0
        %2211 = vmatprep.subr.mxu0 0.0
        %2212 = vmatpush1.msra.mxu0 0.0
        %2213 = vmatprep.subr.mxu0 0.0
        %2214 = vmatpush1.msra.mxu0 0.0
        %2215 = vmatprep.subr.mxu0 0.0
        %2216 = vmatpush1.msra.mxu0 0.0
        %2217 = vmatprep.subr.mxu0 0.0
        %2218 = vmatpush1.msra.mxu0 0.0
        %2219 = vmatprep.subr.mxu0 0.0
        %2220 = vmatpush1.msra.mxu0 0.0
        %2221 = vmatprep.subr.mxu0 0.0
        %2222 = vmatpush1.msra.mxu0 0.0
        %2223 = vmatprep.subr.mxu0 0.0
        %2224 = vmatpush1.msra.mxu0 0.0
        %2225 = vmatprep.subr.mxu0 0.0
        %2226 = vmatpush1.msra.mxu0 0.0
        %2227 = vmatprep.subr.mxu0 0.0
        %2228 = vmatpush1.msra.mxu0 0.0
        %2229 = vmatprep.subr.mxu0 0.0
        %2230 = vmatpush1.msra.mxu0 0.0
        %2231 = vmatprep.subr.mxu0 0.0
        %2232 = vmatpush1.msra.mxu0 0.0
        %2233 = vmatprep.subr.mxu0 0.0
        %2234 = vmatpush1.msra.mxu0 0.0
        %2235 = vmatprep.subr.mxu0 0.0
        %2236 = vmatpush1.msra.mxu0 0.0
        %2237 = vmatprep.subr.mxu0 0.0
        %2238 = vmatpush1.msra.mxu0 0.0
        %2239 = vmatprep.subr.mxu0 0.0
        %2240 = vmatpush1.msra.mxu0 0.0
        %2241 = vmatprep.mubr.f32.mxu0 0.0
        %2242 = vmatmul.mubr.f32.gmra.mrb[0].mxu0 %v744
        %v2243 = vpop.f32.mrb[0].mxu0
        %v2244 = vadd.f32 0.0, %v2243
        %v2245 = vpop.f32.mrb[0].mxu0
        %2246 = vmatprep.mubr.f32.mxu0 0.0
        %2247 = vmatmul.mubr.f32.gmra.mrb[0].mxu0 %v747
        %v2248 = vpop.f32.mrb[0].mxu0
        %v2249 = vadd.f32 0.0, %v2248
        %v2250 = vpop.f32.mrb[0].mxu0
        %2251 = vdwg.mxu0
        %2252 = vmatprep.subr.mxu0 0.0
        %2253 = vmatpush1.msra.mxu0 %v690
        %2254 = vmatprep.subr.mxu0 0.0
        %2255 = vmatpush1.msra.mxu0 %v695
        %2256 = vmatprep.subr.mxu0 0.0
        %2257 = vmatpush1.msra.mxu0 0.0
        %2258 = vmatprep.subr.mxu0 0.0
        %2259 = vmatpush1.msra.mxu0 0.0
        %2260 = vmatprep.subr.mxu0 0.0
        %2261 = vmatpush1.msra.mxu0 0.0
        %2262 = vmatprep.subr.mxu0 0.0
        %2263 = vmatpush1.msra.mxu0 0.0
        %2264 = vmatprep.subr.mxu0 0.0
        %2265 = vmatpush1.msra.mxu0 0.0
        %2266 = vmatprep.subr.mxu0 0.0
        %2267 = vmatpush1.msra.mxu0 0.0
        %2268 = vmatprep.subr.mxu0 0.0
        %2269 = vmatpush1.msra.mxu0 0.0
        %2270 = vmatprep.subr.mxu0 0.0
        %2271 = vmatpush1.msra.mxu0 0.0
        %2272 = vmatprep.subr.mxu0 0.0
        %2273 = vmatpush1.msra.mxu0 0.0
        %2274 = vmatprep.subr.mxu0 0.0
        %2275 = vmatpush1.msra.mxu0 0.0
        %2276 = vmatprep.subr.mxu0 0.0
        %2277 = vmatpush1.msra.mxu0 0.0
        %2278 = vmatprep.subr.mxu0 0.0
        %2279 = vmatpush1.msra.mxu0 0.0
        %2280 = vmatprep.subr.mxu0 0.0
        %2281 = vmatpush1.msra.mxu0 0.0
        %2282 = vmatprep.subr.mxu0 0.0
        %2283 = vmatpush1.msra.mxu0 0.0
        %2284 = vmatprep.subr.mxu0 0.0
        %2285 = vmatpush1.msra.mxu0 0.0
        %2286 = vmatprep.subr.mxu0 0.0
        %2287 = vmatpush1.msra.mxu0 0.0
        %2288 = vmatprep.subr.mxu0 0.0
        %2289 = vmatpush1.msra.mxu0 0.0
        %2290 = vmatprep.subr.mxu0 0.0
        %2291 = vmatpush1.msra.mxu0 0.0
        %2292 = vmatprep.subr.mxu0 0.0
        %2293 = vmatpush1.msra.mxu0 0.0
        %2294 = vmatprep.subr.mxu0 0.0
        %2295 = vmatpush1.msra.mxu0 0.0
        %2296 = vmatprep.subr.mxu0 0.0
        %2297 = vmatpush1.msra.mxu0 0.0
        %2298 = vmatprep.subr.mxu0 0.0
        %2299 = vmatpush1.msra.mxu0 0.0
        %2300 = vmatprep.subr.mxu0 0.0
        %2301 = vmatpush1.msra.mxu0 0.0
        %2302 = vmatprep.subr.mxu0 0.0
        %2303 = vmatpush1.msra.mxu0 0.0
        %2304 = vmatprep.subr.mxu0 0.0
        %2305 = vmatpush1.msra.mxu0 0.0
        %2306 = vmatprep.subr.mxu0 0.0
        %2307 = vmatpush1.msra.mxu0 0.0
        %2308 = vmatprep.subr.mxu0 0.0
        %2309 = vmatpush1.msra.mxu0 0.0
        %2310 = vmatprep.subr.mxu0 0.0
        %2311 = vmatpush1.msra.mxu0 0.0
        %2312 = vmatprep.subr.mxu0 0.0
        %2313 = vmatpush1.msra.mxu0 0.0
        %2314 = vmatprep.subr.mxu0 0.0
        %2315 = vmatpush1.msra.mxu0 0.0
        %2316 = vmatprep.mubr.f32.mxu0 0.0
        %2317 = vmatmul.mubr.f32.gmra.mrb[0].mxu0 %v744
        %v2318 = vpop.f32.mrb[0].mxu0
        %v2319 = vadd.f32 0.0, %v2318
        %v2320 = vpop.f32.mrb[0].mxu0
        %2321 = vmatprep.mubr.f32.mxu0 0.0
        %2322 = vmatmul.mubr.f32.gmra.mrb[0].mxu0 %v747
        %v2323 = vpop.f32.mrb[0].mxu0
        %v2324 = vadd.f32 0.0, %v2323
        %v2325 = vpop.f32.mrb[0].mxu0
        %2326 = vdwg.mxu0
        %2327 = vmatprep.subr.mxu0 0.0
        %2328 = vmatpush1.msra.mxu0 %v730
        %2329 = vmatprep.subr.mxu0 0.0
        %2330 = vmatpush1.msra.mxu0 %v735
        %2331 = vmatprep.subr.mxu0 0.0
        %2332 = vmatpush1.msra.mxu0 0.0
        %2333 = vmatprep.subr.mxu0 0.0
        %2334 = vmatpush1.msra.mxu0 0.0
        %2335 = vmatprep.subr.mxu0 0.0
        %2336 = vmatpush1.msra.mxu0 0.0
        %2337 = vmatprep.subr.mxu0 0.0
        %2338 = vmatpush1.msra.mxu0 0.0
        %2339 = vmatprep.subr.mxu0 0.0
        %2340 = vmatpush1.msra.mxu0 0.0
        %2341 = vmatprep.subr.mxu0 0.0
        %2342 = vmatpush1.msra.mxu0 0.0
        %2343 = vmatprep.subr.mxu0 0.0
        %2344 = vmatpush1.msra.mxu0 0.0
        %2345 = vmatprep.subr.mxu0 0.0
        %2346 = vmatpush1.msra.mxu0 0.0
        %2347 = vmatprep.subr.mxu0 0.0
        %2348 = vmatpush1.msra.mxu0 0.0
        %2349 = vmatprep.subr.mxu0 0.0
        %2350 = vmatpush1.msra.mxu0 0.0
        %2351 = vmatprep.subr.mxu0 0.0
        %2352 = vmatpush1.msra.mxu0 0.0
        %2353 = vmatprep.subr.mxu0 0.0
        %2354 = vmatpush1.msra.mxu0 0.0
        %2355 = vmatprep.subr.mxu0 0.0
        %2356 = vmatpush1.msra.mxu0 0.0
        %2357 = vmatprep.subr.mxu0 0.0
        %2358 = vmatpush1.msra.mxu0 0.0
        %2359 = vmatprep.subr.mxu0 0.0
        %2360 = vmatpush1.msra.mxu0 0.0
        %2361 = vmatprep.subr.mxu0 0.0
        %2362 = vmatpush1.msra.mxu0 0.0
        %2363 = vmatprep.subr.mxu0 0.0
        %2364 = vmatpush1.msra.mxu0 0.0
        %2365 = vmatprep.subr.mxu0 0.0
        %2366 = vmatpush1.msra.mxu0 0.0
        %2367 = vmatprep.subr.mxu0 0.0
        %2368 = vmatpush1.msra.mxu0 0.0
        %2369 = vmatprep.subr.mxu0 0.0
        %2370 = vmatpush1.msra.mxu0 0.0
        %2371 = vmatprep.subr.mxu0 0.0
        %2372 = vmatpush1.msra.mxu0 0.0
        %2373 = vmatprep.subr.mxu0 0.0
        %2374 = vmatpush1.msra.mxu0 0.0
        %2375 = vmatprep.subr.mxu0 0.0
        %2376 = vmatpush1.msra.mxu0 0.0
        %2377 = vmatprep.subr.mxu0 0.0
        %2378 = vmatpush1.msra.mxu0 0.0
        %2379 = vmatprep.subr.mxu0 0.0
        %2380 = vmatpush1.msra.mxu0 0.0
        %2381 = vmatprep.subr.mxu0 0.0
        %2382 = vmatpush1.msra.mxu0 0.0
        %2383 = vmatprep.subr.mxu0 0.0
        %2384 = vmatpush1.msra.mxu0 0.0
        %2385 = vmatprep.subr.mxu0 0.0
        %2386 = vmatpush1.msra.mxu0 0.0
        %2387 = vmatprep.subr.mxu0 0.0
        %2388 = vmatpush1.msra.mxu0 0.0
        %2389 = vmatprep.subr.mxu0 0.0
        %2390 = vmatpush1.msra.mxu0 0.0
        %2391 = vmatprep.mubr.f32.mxu0 0.0
        %2392 = vmatmul.mubr.f32.gmra.mrb[0].mxu0 %v744
        %v2393 = vpop.f32.mrb[0].mxu0
        %v2394 = vadd.f32 0.0, %v2393
        %v2395 = vpop.f32.mrb[0].mxu0
        %2396 = vmatprep.mubr.f32.mxu0 0.0
        %2397 = vmatmul.mubr.f32.gmra.mrb[0].mxu0 %v747
        %v2398 = vpop.f32.mrb[0].mxu0
        %v2399 = vadd.f32 0.0, %v2398
        %v2400 = vpop.f32.mrb[0].mxu0
        %2401 = vdwg.mxu0
        %v2402 = vmul.f32 %v2094, %v2094
        %v2403 = vmul.f32 %v2099, %v2099
        %v2404 = vmul.f32 %v2169, %v2169
        %v2405 = vmul.f32 %v2174, %v2174
        %v2406 = vmul.f32 %v2094, %v2169
        %v2407 = vmul.f32 %v2099, %v2174
        %v2408 = vsub.f32 %v2244, %v2402
        %v2409 = vsub.f32 %v2249, %v2403
        %v2410 = vsub.f32 %v2319, %v2404
        %v2411 = vsub.f32 %v2324, %v2405
        %v2412 = vsub.f32 %v2394, %v2406
        %v2413 = vsub.f32 %v2399, %v2407
        %v2414 = vmul.f32 %v2406, 2.0
        %v2415 = vmul.f32 %v2407, 2.0
        %v2416 = vadd.f32 %v2414, 0.0001
        %v2417 = vadd.f32 %v2415, 0.0001
        %v2418 = vmul.f32 %v2412, 2.0
        %v2419 = vmul.f32 %v2413, 2.0
        %v2420 = vadd.f32 %v2418, 0.0009
        %v2421 = vadd.f32 %v2419, 0.0009
        %v2422 = vmul.f32 %v2416, %v2420
        %v2423 = vmul.f32 %v2417, %v2421
        %v2424 = vadd.f32 %v2402, %v2404
        %v2425 = vadd.f32 %v2403, %v2405
        %v2426 = vadd.f32 %v2424, 0.0001
        %v2427 = vadd.f32 %v2425, 0.0001
        %v2428 = vadd.f32 %v2408, %v2410
        %v2429 = vadd.f32 %v2409, %v2411
        %v2430 = vadd.f32 %v2428, 0.0009
        %v2431 = vadd.f32 %v2429, 0.0009
        %v2432 = vmul.f32 %v2426, %v2430
        %v2433 = vmul.f32 %v2427, %v2431
        %v2434 = vrcp.pop %v2432
        %v2435 = vrcp.pop %v2433
        %v2436 = vmul.f32 %v2432, %v2434
        %v2437 = vmul.f32 %v2433, %v2435
        %v2438 = vsub.f32 2.0, %v2436
        %v2439 = vsub.f32 2.0, %v2437
        %v2440 = vmul.f32 %v2434, %v2438
        %v2441 = vmul.f32 %v2435, %v2439
        %v2442 = vmul.f32 %v2422, %v2440
        %v2443 = vmul.f32 %v2423, %v2441
        %v2444 = vsel %vm740, %v2442, 0.0
        %v2445 = vsel %vm740, %v2443, 0.0
        %v2446 = vadd.f32 %v2444, %v2445
        %v2447 = vrot.slane %v2446, 4
        %v2448 = vadd.f32 %v2446, %v2447
        %v2449 = vrot.slane %v2448, 2
        %v2450 = vadd.f32 %v2448, %v2449
        %v2451 = vrot.slane %v2450, 1
        %v2452 = vadd.f32 %v2450, %v2451
        %vm2453 = vcmask 1040384
        %v2454 = vsel %vm2453, %v1174, %v1600
        %vm2455 = vcmask 1041408
        %v2456 = vsel %vm2455, %v2454, %v2026
        %vm2457 = vcmask 1042432
        %v2458 = vsel %vm2457, %v2456, %v2452
        %vm2459 = vcmask 1043456
        %v2460 = vsel %vm2459, %v2458, 0.0
        %2461 = vadd.xlane.f32.xlu0 %v2460
        %v2462 = vpop.xlane.xlu0 %2461
        %v2464 = vlaneseq
        %v2465 = vshrl.u32 %v2464, 7
        %v2466 = vsub.s32 %v739, %v2465
        %v2467 = vrot.slane %v2462, %v2466
        %vm2469 = vcmask 24576
        %2470 = vst.msk [vmem:[%s307] sm:$0x1] %vm2469, %v2467
        %s2471 = sand.u32 %s145, 1
        %s2472 = scalar_lea.sflag [#allocation4], %s2471
        %s2473 = sand.u32 %s145, 1
        %s2474 = scalar_lea.vmem [#allocation10], %s2473
        // Predicated region
        $region53: #{tpu_custom_call.1} parent=35 // pred_check
          %p2475 = pneg %p155
        $region54: #{tpu_custom_call.1} parent=35 // pred_check_branch
          %2477 = sbr.rel (%p2475) target = $region56
        $region55: #{tpu_custom_call.1} parent=35 // pred_region
          %s2479 = ssub.s32 16, 16
          %2480 = vsyncadd %s2472, %s2479
          %s2481 = sadd.s32 %s30, %s29
          %s2482 = smul.addr %s2481, 16
          %s2483 = scalar_lea.hbm %s4, %s2482
          %s2485 = sshll.u32 %s2474, 4
          %s2486 = int_to_ptr.vmem [resolvable:$true] %s2485
          %2488 = dma.vmem_to_hbm [thread:$0]  %s2486, 16, %s2483, %s2472
        $region56: #{tpu_custom_call.1} parent=35 // pred_fallthru
          _
      $region36: #{tpu_custom_call.1} parent=5 // pred_fallthru
        _
      %p2489 = scmp.le.s32.totalorder 2, %s20
      // Predicated region
      $region57: #{tpu_custom_call.1} parent=5 // pred_check
        %p2490 = pneg %p2489
      $region58: #{tpu_custom_call.1} parent=5 // pred_check_branch
        %2492 = sbr.rel (%p2490) target = $region60
      $region59: #{tpu_custom_call.1} parent=5 // pred_region
        %s2493 = ssub.s32 %s20, 2
        // Predicated region
        $region61: #{tpu_custom_call.1} parent=59 // pred_check
          %p2494 = pneg %p161
        $region62: #{tpu_custom_call.1} parent=59 // pred_check_branch
          %2496 = sbr.rel (%p2494) target = $region64
        $region63: #{tpu_custom_call.1} parent=59 // pred_region
          %s2497 = sand.u32 %s146, 1
          %s2498 = scalar_lea.sflag [#allocation4], %s2497
          %s2499 = sand.u32 %s146, 1
          %s2500 = scalar_lea.vmem [#allocation10], %s2499
          %2501 = dma.done %s2498, 16
        $region64: #{tpu_custom_call.1} parent=59 // pred_fallthru
          _
      $region60: #{tpu_custom_call.1} parent=5 // pred_fallthru
        _
    $region6: #{tpu_custom_call.1} parent=1 // loop_footer
      %s24 = sadd.s32 1, %s20
    $region7: #{tpu_custom_call.1} parent=1 // loop_footer_branch
      %19 = sbr.rel target = $region3
    $region8: #{tpu_custom_call.1} parent=1 // loop_exit
      _
    %2502 = vsyncpa [#allocation3], 1
    %s2503 = scalar_lea.sflag [#allocation3], 1
    %2504 = vsyncpa %s2503, 1
    %2505 = vsyncpa [#allocation6], 1
    %s2506 = scalar_lea.sflag [#allocation6], 1
    %2507 = vsyncpa %s2506, 1
    %2508 = vsyncpa [#allocation9], 1
    %2509 = vsyncpa [#allocation4], 1
    %s2510 = scalar_lea.sflag [#allocation4], 1
    %2511 = vsyncpa %s2510, 1

</llo_original>
